<compile_context>
chip_gen: v6e
topology: v6e:2x2x1
jax: 0.10.0
libtpu: 0.0.40
codegen_flags: <defaults>
</compile_context>

<pallas_src>
import functools
import math

import jax
import jax.numpy as jnp
from jax.experimental import pallas as pl
from jax.experimental.pallas import tpu as pltpu

_HI = jax.lax.Precision.HIGHEST


def _sigmoid(z):
    # Same formulation in kernel and reference (exp is EUP-lowered in Mosaic).
    return 1.0 / (1.0 + jnp.exp(-z))


def _vmem_limit_bytes():
    """Per-generation VMEM budget: 3/4 of per-core capacity, safe fallback."""
    cap = 64 * 1024 * 1024          # conservative (v7x physical per-core VMEM)
    try:
        info = pltpu.get_tpu_info()
        cap = int(getattr(info, "vmem_capacity_bytes", cap)) or cap
    except Exception:
        pass
    cap = max(32 * 1024 * 1024, min(cap, 128 * 1024 * 1024))
    return (cap * 3) // 4            # ~48 MiB on v7x, ~96 MiB on v5e/v6e


# ---------------------------------------------------------------------------
# Fused single-pass path (read x once, write out once).
# ---------------------------------------------------------------------------
def _make_fused_kernel(rows_total, row_tile):
    need_row_mask = (rows_total % row_tile) != 0

    def kernel(x_ref, m1h_ref, b1h_ref, m2h_ref, b2h_ref,
               m1l_ref, b1l_ref, m2l_ref, b2l_ref, o_ref):
        x = x_ref[...]                                     # (Rt, HW) f32

        # Per-row spatial max / min (block covers the full HW extent).
        mx = jnp.max(x, axis=-1, keepdims=True)            # (Rt, 1)
        mn = jnp.min(x, axis=-1, keepdims=True)            # (Rt, 1)

        if need_row_mask:
            # Edge row block: padded rows may hold garbage (possibly NaN/inf).
            # Zero them so they cannot leak into valid batches through the
            # (block-diagonal) excitation matmul.  Padded rows always start at
            # a batch boundary (row_tile % C == 0 and R % C == 0).
            r0 = pl.program_id(0) * row_tile
            row = jax.lax.broadcasted_iota(jnp.int32, (row_tile, 1), 0)
            valid = (r0 + row) < rows_total
            mx = jnp.where(valid, mx, 0.0)
            mn = jnp.where(valid, mn, 0.0)

        # Excitation MLP on (Rt, 1) columns via block-diagonal (I ⊗ W^T)
        # weights built once in the wrapper: keeps batch*channel rows on the
        # sublane axis (no in-kernel sublane<->lane relayout).
        def excite(v, m1, b1, m2, b2):
            h = jnp.maximum(
                jnp.dot(m1[...], v, precision=_HI,
                        preferred_element_type=jnp.float32) + b1[...], 0.0)
            z = jnp.dot(m2[...], h, precision=_HI,
                        preferred_element_type=jnp.float32) + b2[...]
            return _sigmoid(z)

        im_h = excite(mx, m1h_ref, b1h_ref, m2h_ref, b2h_ref)   # (Rt, 1)
        im_l = excite(mn, m1l_ref, b1l_ref, m2l_ref, b2l_ref)   # (Rt, 1)

        inv = pl.reciprocal(jnp.maximum(im_h - im_l, jnp.float32(1e-5)),
                            approx=False)
        o_ref[...] = jnp.clip((x - im_l) * inv, 0.0, 1.0)

    return kernel


def _fused_row_tile(R, C, HW, budget_bytes, row_cap=256):
    """Row tile for the fused path: multiple of lcm(8, C) (sublane- and
    batch-aligned), capped, fitting the per-generation VMEM block budget.
    Returns 0 if no legal tile fits -> caller uses the two-pass fallback."""
    unit = (8 * C) // math.gcd(8, C)

    def bytes_needed(rt):
        xio = 4 * rt * HW * 4                      # in + out, double-buffered
        wts = 4 * rt * rt * 4 + 4 * rt * 4         # 4 block-diag mats + biases
        return xio + 2 * wts

    if R <= max(unit, row_cap) and bytes_needed(R) <= budget_bytes:
        return R                                    # single full-dim row block
    rt = (min(R, row_cap) // unit) * unit
    while rt >= unit:
        if bytes_needed(rt) <= budget_bytes:
            return rt
        rt -= unit
    return 0


def _fused_forward(x2, params, R, C, HW, row_tile, vmem_limit):
    f32 = jnp.float32
    nb = row_tile // C
    eye = jnp.eye(nb, dtype=f32)

    def expand_w(w):                       # (C, C) (in, out) -> I_nb ⊗ w.T
        return jnp.kron(eye, w.T.astype(f32))

    def expand_b(b):                       # (1, C) -> (row_tile, 1)
        return jnp.tile(b.astype(f32), (nb, 1)).reshape(row_tile, 1)

    m1h, m2h = expand_w(params["w1h"]), expand_w(params["w2h"])
    m1l, m2l = expand_w(params["w1l"]), expand_w(params["w2l"])
    b1h, b2h = expand_b(params["b1h"]), expand_b(params["b2h"])
    b1l, b2l = expand_b(params["b1l"]), expand_b(params["b2l"])

    n_rows = pl.cdiv(R, row_tile)
    x_spec = pl.BlockSpec((row_tile, HW), lambda r: (r, 0))
    w_spec = pl.BlockSpec((row_tile, row_tile), lambda r: (0, 0))
    b_spec = pl.BlockSpec((row_tile, 1), lambda r: (0, 0))

    return pl.pallas_call(
        _make_fused_kernel(R, row_tile),
        out_shape=jax.ShapeDtypeStruct((R, HW), f32),
        grid=(n_rows,),
        in_specs=[x_spec, w_spec, b_spec, w_spec, b_spec,
                  w_spec, b_spec, w_spec, b_spec],
        out_specs=x_spec,
        compiler_params=pltpu.CompilerParams(
            dimension_semantics=("parallel",),
            vmem_limit_bytes=vmem_limit),
    )(x2, m1h, b1h, m2h, b2h, m1l, b1l, m2l, b2l)


# ---------------------------------------------------------------------------
# Two-pass fallback (huge H*W that cannot fit one full row block in VMEM).
# ---------------------------------------------------------------------------
def _make_reduce_kernel(hw_total, hw_tile):
    """Row-wise running max/min over the lane (spatial) axis."""
    need_mask = (hw_total % hw_tile) != 0
    n_chunks = hw_tile // 128 if (hw_tile % 128 == 0) else 1

    def kernel(x_ref, mx_ref, mn_ref):
        h = pl.program_id(1)

        @pl.when(h == 0)
        def _init():
            mx_ref[...] = jnp.full(mx_ref.shape, -jnp.inf, dtype=mx_ref.dtype)
            mn_ref[...] = jnp.full(mn_ref.shape, jnp.inf, dtype=mn_ref.dtype)

        x = x_ref[...]                                     # (Rt, HWt) f32

        if need_mask:
            lane = jax.lax.broadcasted_iota(jnp.int32, x.shape, 1)
            valid = (h * hw_tile + lane) < hw_total
            x_mx = jnp.where(valid, x, -jnp.inf)
            x_mn = jnp.where(valid, x, jnp.inf)
        else:
            x_mx = x
            x_mn = x

        # Chunked VPU max/min then one cross-lane (XLU) reduce per row.
        if n_chunks > 1:
            acc_mx = x_mx[:, 0:128]
            acc_mn = x_mn[:, 0:128]
            for j in range(1, n_chunks):
                acc_mx = jnp.maximum(acc_mx, x_mx[:, j * 128:(j + 1) * 128])
                acc_mn = jnp.minimum(acc_mn, x_mn[:, j * 128:(j + 1) * 128])
        else:
            acc_mx = x_mx
            acc_mn = x_mn

        mx_ref[...] = jnp.maximum(mx_ref[...],
                                  jnp.max(acc_mx, axis=-1, keepdims=True))
        mn_ref[...] = jnp.minimum(mn_ref[...],
                                  jnp.min(acc_mn, axis=-1, keepdims=True))

    return kernel


def _normalize_kernel(x_ref, iml_ref, scale_ref, o_ref):
    # scale = 1/max(im_h-im_l, 1e-5) precomputed per row in XLA; keep the
    # subtract in-kernel (numerically sound order) -> one sub + one mul /elem.
    o_ref[...] = jnp.clip((x_ref[...] - iml_ref[...]) * scale_ref[...],
                          0.0, 1.0)


def _pick_tile(total, unit, max_tile):
    """Full dim when it already fits; otherwise the largest unit-aligned tile
    <= max_tile (never a full unaligned dim).  Edge blocks are handled via
    lane masking (pass 1) and Pallas' masked edge writes."""
    if total <= max_tile:
        return total
    return max(unit, (max_tile // unit) * unit)


def _excite(v, w1, b1, w2, b2):
    h = jnp.maximum(jnp.dot(v, w1, precision=_HI) + b1, 0.0)
    return _sigmoid(jnp.dot(h, w2, precision=_HI) + b2)


def _two_pass_forward(x2, params, B, C, R, HW, vmem_limit):
    f32 = jnp.float32
    row_tile = _pick_tile(R, 8, 256)
    hw_tile_max = 4096 if vmem_limit >= 64 * 1024 * 1024 else 2048
    hw_tile = _pick_tile(HW, 128, hw_tile_max)
    n_rows = pl.cdiv(R, row_tile)
    n_hw = pl.cdiv(HW, hw_tile)

    # ---- pass 1: per-(b, c) max / min over the spatial axis ----------------
    mx_col, mn_col = pl.pallas_call(
        _make_reduce_kernel(HW, hw_tile),
        out_shape=(jax.ShapeDtypeStruct((R, 1), f32),
                   jax.ShapeDtypeStruct((R, 1), f32)),
        grid=(n_rows, n_hw),
        in_specs=[pl.BlockSpec((row_tile, hw_tile), lambda r, h: (r, h))],
        out_specs=(pl.BlockSpec((row_tile, 1), lambda r, h: (r, 0)),
                   pl.BlockSpec((row_tile, 1), lambda r, h: (r, 0))),
        compiler_params=pltpu.CompilerParams(
            dimension_semantics=("parallel", "arbitrary"),
            vmem_limit_bytes=vmem_limit),
    )(x2)

    # ---- tiny excitation MLPs ((B,C)x(C,C)) in plain XLA between passes ----
    mx = mx_col.reshape(B, C)
    mn = mn_col.reshape(B, C)
    im_h = _excite(mx, params["w1h"], params["b1h"], params["w2h"], params["b2h"])
    im_l = _excite(mn, params["w1l"], params["b1l"], params["w2l"], params["b2l"])
    scale = 1.0 / jnp.maximum(im_h - im_l, jnp.float32(1e-5))
    im_l_col = im_l.reshape(R, 1).astype(f32)
    scale_col = scale.reshape(R, 1).astype(f32)

    # ---- pass 2: normalize + clip (lane-dense, mem-bound) ------------------
    return pl.pallas_call(
        _normalize_kernel,
        out_shape=jax.ShapeDtypeStruct((R, HW), f32),
        grid=(n_rows, n_hw),
        in_specs=[pl.BlockSpec((row_tile, hw_tile), lambda r, h: (r, h)),
                  pl.BlockSpec((row_tile, 1), lambda r, h: (r, 0)),
                  pl.BlockSpec((row_tile, 1), lambda r, h: (r, 0))],
        out_specs=pl.BlockSpec((row_tile, hw_tile), lambda r, h: (r, h)),
        compiler_params=pltpu.CompilerParams(
            dimension_semantics=("parallel", "parallel"),
            vmem_limit_bytes=vmem_limit),
    )(x2, im_l_col, scale_col)


# ---------------------------------------------------------------------------
# Public entry point.
# ---------------------------------------------------------------------------
def anb_forward(x_nchw, params, *, force_two_pass=False):
    """x_nchw: (B, C, H, W) float32.  params: excitation weights stored
    pre-transposed as (in_features, out_features); biases as (1, C)."""
    B, C, H, W = x_nchw.shape
    HW = H * W
    R = B * C
    x2 = x_nchw.reshape(R, HW).astype(jnp.float32)

    vmem_limit = _vmem_limit_bytes()
    row_tile = 0 if force_two_pass else _fused_row_tile(
        R, C, HW, (vmem_limit * 3) // 4)

    if row_tile > 0:
        out2 = _fused_forward(x2, params, R, C, HW, row_tile, vmem_limit)
    else:
        out2 = _two_pass_forward(x2, params, B, C, R, HW, vmem_limit)
    return out2.reshape(B, C, H, W)


def _reference(x, p):
    """Pure-JAX reference mirroring the PyTorch forward."""
    B, C, H, W = x.shape
    xf = x.reshape(B, C, -1)
    mx = jnp.max(xf, axis=-1)                                      # (B, C)
    mn = jnp.min(xf, axis=-1)                                      # (B, C)
    im_h = _excite(mx, p["w1h"], p["b1h"], p["w2h"], p["b2h"])[:, :, None, None]
    im_l = _excite(mn, p["w1l"], p["b1l"], p["w2l"], p["b2l"])[:, :, None, None]
    y = (x - im_l) / jnp.maximum(im_h - im_l, 1e-5)
    return jnp.clip(y, 0.0, 1.0)


if __name__ == "__main__":
    B, C, H, W = 2, 4, 16, 16   # in_channels = 4, r = 1 -> hidden = 4
    key = jax.random.PRNGKey(0)
    kx, k1, k2, k3, k4, k5, k6, k7, k8 = jax.random.split(key, 9)

    x = jax.random.normal(kx, (B, C, H, W), dtype=jnp.float32)

    def lin(k, fan_in, shape):
        bound = 1.0 / jnp.sqrt(fan_in)
        return jax.random.uniform(k, shape, jnp.float32, -bound, bound)

    # weights stored as (in_features, out_features); biases as (1, C)
    params = {
        "w1h": lin(k1, C, (C, C)), "b1h": lin(k2, C, (1, C)),
        "w2h": lin(k3, C, (C, C)), "b2h": lin(k4, C, (1, C)),
        "w1l": lin(k5, C, (C, C)), "b1l": lin(k6, C, (1, C)),
        "w2l": lin(k7, C, (C, C)), "b2l": lin(k8, C, (1, C)),
    }

    ref = _reference(x, params)

    # Fused single-pass path (default).  The excitation MLP runs in-kernel on
    # the MXU; 1-2 ULP differences vs the XLA reference get amplified by the
    # 1/max(im_h-im_l, 1e-5) normalization, hence the looser tolerance.
    anb_fused = jax.jit(anb_forward)
    out = anb_fused(x, params)
    jax.block_until_ready(out)
    assert jnp.allclose(out, ref, atol=5e-3, rtol=5e-3), "fused mismatch"

    # Two-pass fallback path (used automatically for very large H*W); its MLP
    # is bit-identical to the reference, so the tolerance stays tight.
    anb_two_pass = jax.jit(functools.partial(anb_forward, force_two_pass=True))
    out2 = anb_two_pass(x, params)
    jax.block_until_ready(out2)
    assert jnp.allclose(out2, ref, atol=1e-5, rtol=1e-5), "two-pass mismatch"

    print("KERNEL_OK")
</pallas_src>

<mosaic_0001>
module attributes {stable_mosaic.version = 11 : i64} {
  func.func @kernel(%arg0: i32, %arg1: memref<8x256xf32, #tpu.memory_space<vmem>>, %arg2: memref<8x8xf32, #tpu.memory_space<vmem>>, %arg3: memref<8x1xf32, #tpu.memory_space<vmem>>, %arg4: memref<8x8xf32, #tpu.memory_space<vmem>>, %arg5: memref<8x1xf32, #tpu.memory_space<vmem>>, %arg6: memref<8x8xf32, #tpu.memory_space<vmem>>, %arg7: memref<8x1xf32, #tpu.memory_space<vmem>>, %arg8: memref<8x8xf32, #tpu.memory_space<vmem>>, %arg9: memref<8x1xf32, #tpu.memory_space<vmem>>, %arg10: memref<8x256xf32, #tpu.memory_space<vmem>>) attributes {dimension_semantics = [#tpu.dimension_semantics<parallel>], iteration_bounds = array<i64: 1>, scalar_prefetch = 0 : i64, scratch_operands = 0 : i64, tpu.core_type = #tpu.core_type<tc>, window_params = [{transform_indices = @transform_0, window_bounds = array<i64: 8, 256>}, {pipeline_mode = #tpu.pipeline_mode<synchronous>, transform_indices = @transform_1, window_bounds = array<i64: 8, 8>}, {pipeline_mode = #tpu.pipeline_mode<synchronous>, transform_indices = @transform_2, window_bounds = array<i64: 8, 1>}, {pipeline_mode = #tpu.pipeline_mode<synchronous>, transform_indices = @transform_3, window_bounds = array<i64: 8, 8>}, {pipeline_mode = #tpu.pipeline_mode<synchronous>, transform_indices = @transform_4, window_bounds = array<i64: 8, 1>}, {pipeline_mode = #tpu.pipeline_mode<synchronous>, transform_indices = @transform_5, window_bounds = array<i64: 8, 8>}, {pipeline_mode = #tpu.pipeline_mode<synchronous>, transform_indices = @transform_6, window_bounds = array<i64: 8, 1>}, {pipeline_mode = #tpu.pipeline_mode<synchronous>, transform_indices = @transform_7, window_bounds = array<i64: 8, 8>}, {pipeline_mode = #tpu.pipeline_mode<synchronous>, transform_indices = @transform_8, window_bounds = array<i64: 8, 1>}, {transform_indices = @transform_9, window_bounds = array<i64: 8, 256>}]} {
    %c0 = arith.constant 0 : index
    %c0_0 = arith.constant 0 : index
    %0 = vector.load %arg1[%c0, %c0_0] : memref<8x256xf32, #tpu.memory_space<vmem>>, vector<8x256xf32>
    %cst = arith.constant dense<0xFF800000> : vector<8xf32>
    %1 = vector.multi_reduction <maximumf>, %0, %cst [1] : vector<8x256xf32> to vector<8xf32>
    %2 = vector.shape_cast %1 : vector<8xf32> to vector<8x1xf32>
    %cst_1 = arith.constant dense<0x7F800000> : vector<8xf32>
    %3 = vector.multi_reduction <minimumf>, %0, %cst_1 [1] : vector<8x256xf32> to vector<8xf32>
    %4 = vector.shape_cast %3 : vector<8xf32> to vector<8x1xf32>
    %c0_2 = arith.constant 0 : index
    %c0_3 = arith.constant 0 : index
    %5 = vector.load %arg2[%c0_2, %c0_3] : memref<8x8xf32, #tpu.memory_space<vmem>>, vector<8x8xf32>
    %cst_4 = arith.constant dense<0.000000e+00> : vector<8x1xf32>
    %6 = tpu.matmul %5, %2, %cst_4 {dimension_numbers = #tpu.dot_dimension_numbers<[1], [0], [0], [1], [0, 0, 1, 1], [], []>, precision = #tpu.contract_precision<fp32>} : vector<8x8xf32>, vector<8x1xf32>, vector<8x1xf32> -> vector<8x1xf32>
    %c0_5 = arith.constant 0 : index
    %c0_6 = arith.constant 0 : index
    %7 = vector.load %arg3[%c0_5, %c0_6] : memref<8x1xf32, #tpu.memory_space<vmem>>, vector<8x1xf32>
    %8 = arith.addf %6, %7 : vector<8x1xf32>
    %cst_7 = arith.constant 0.000000e+00 : f32
    %9 = vector.broadcast %cst_7 : f32 to vector<8x1xf32>
    %10 = arith.maximumf %8, %9 : vector<8x1xf32>
    %c0_8 = arith.constant 0 : index
    %c0_9 = arith.constant 0 : index
    %11 = vector.load %arg4[%c0_8, %c0_9] : memref<8x8xf32, #tpu.memory_space<vmem>>, vector<8x8xf32>
    %cst_10 = arith.constant dense<0.000000e+00> : vector<8x1xf32>
    %12 = tpu.matmul %11, %10, %cst_10 {dimension_numbers = #tpu.dot_dimension_numbers<[1], [0], [0], [1], [0, 0, 1, 1], [], []>, precision = #tpu.contract_precision<fp32>} : vector<8x8xf32>, vector<8x1xf32>, vector<8x1xf32> -> vector<8x1xf32>
    %c0_11 = arith.constant 0 : index
    %c0_12 = arith.constant 0 : index
    %13 = vector.load %arg5[%c0_11, %c0_12] : memref<8x1xf32, #tpu.memory_space<vmem>>, vector<8x1xf32>
    %14 = arith.addf %12, %13 : vector<8x1xf32>
    %cst_13 = arith.constant 0.000000e+00 : f32
    %15 = vector.broadcast %cst_13 : f32 to vector<8x1xf32>
    %16 = arith.subf %15, %14 : vector<8x1xf32>
    %17 = math.exp %16 : vector<8x1xf32>
    %cst_14 = arith.constant 1.000000e+00 : f32
    %18 = vector.broadcast %cst_14 : f32 to vector<8x1xf32>
    %19 = arith.addf %18, %17 : vector<8x1xf32>
    %cst_15 = arith.constant 1.000000e+00 : f32
    %20 = vector.broadcast %cst_15 : f32 to vector<8x1xf32>
    %21 = arith.divf %20, %19 : vector<8x1xf32>
    %c0_16 = arith.constant 0 : index
    %c0_17 = arith.constant 0 : index
    %22 = vector.load %arg6[%c0_16, %c0_17] : memref<8x8xf32, #tpu.memory_space<vmem>>, vector<8x8xf32>
    %cst_18 = arith.constant dense<0.000000e+00> : vector<8x1xf32>
    %23 = tpu.matmul %22, %4, %cst_18 {dimension_numbers = #tpu.dot_dimension_numbers<[1], [0], [0], [1], [0, 0, 1, 1], [], []>, precision = #tpu.contract_precision<fp32>} : vector<8x8xf32>, vector<8x1xf32>, vector<8x1xf32> -> vector<8x1xf32>
    %c0_19 = arith.constant 0 : index
    %c0_20 = arith.constant 0 : index
    %24 = vector.load %arg7[%c0_19, %c0_20] : memref<8x1xf32, #tpu.memory_space<vmem>>, vector<8x1xf32>
    %25 = arith.addf %23, %24 : vector<8x1xf32>
    %cst_21 = arith.constant 0.000000e+00 : f32
    %26 = vector.broadcast %cst_21 : f32 to vector<8x1xf32>
    %27 = arith.maximumf %25, %26 : vector<8x1xf32>
    %c0_22 = arith.constant 0 : index
    %c0_23 = arith.constant 0 : index
    %28 = vector.load %arg8[%c0_22, %c0_23] : memref<8x8xf32, #tpu.memory_space<vmem>>, vector<8x8xf32>
    %cst_24 = arith.constant dense<0.000000e+00> : vector<8x1xf32>
    %29 = tpu.matmul %28, %27, %cst_24 {dimension_numbers = #tpu.dot_dimension_numbers<[1], [0], [0], [1], [0, 0, 1, 1], [], []>, precision = #tpu.contract_precision<fp32>} : vector<8x8xf32>, vector<8x1xf32>, vector<8x1xf32> -> vector<8x1xf32>
    %c0_25 = arith.constant 0 : index
    %c0_26 = arith.constant 0 : index
    %30 = vector.load %arg9[%c0_25, %c0_26] : memref<8x1xf32, #tpu.memory_space<vmem>>, vector<8x1xf32>
    %31 = arith.addf %29, %30 : vector<8x1xf32>
    %cst_27 = arith.constant 0.000000e+00 : f32
    %32 = vector.broadcast %cst_27 : f32 to vector<8x1xf32>
    %33 = arith.subf %32, %31 : vector<8x1xf32>
    %34 = math.exp %33 : vector<8x1xf32>
    %cst_28 = arith.constant 1.000000e+00 : f32
    %35 = vector.broadcast %cst_28 : f32 to vector<8x1xf32>
    %36 = arith.addf %35, %34 : vector<8x1xf32>
    %cst_29 = arith.constant 1.000000e+00 : f32
    %37 = vector.broadcast %cst_29 : f32 to vector<8x1xf32>
    %38 = arith.divf %37, %36 : vector<8x1xf32>
    %39 = arith.subf %21, %38 : vector<8x1xf32>
    %cst_30 = arith.constant 9.99999974E-6 : f32
    %40 = vector.broadcast %cst_30 : f32 to vector<8x1xf32>
    %41 = arith.maximumf %39, %40 : vector<8x1xf32>
    %42 = tpu.reciprocal %41 : vector<8x1xf32> -> vector<8x1xf32>
    %43 = vector.broadcast %38 : vector<8x1xf32> to vector<8x256xf32>
    %44 = arith.subf %0, %43 : vector<8x256xf32>
    %45 = vector.broadcast %42 : vector<8x1xf32> to vector<8x256xf32>
    %46 = arith.mulf %44, %45 : vector<8x256xf32>
    %cst_31 = arith.constant 0.000000e+00 : f32
    %cst_32 = arith.constant 1.000000e+00 : f32
    %47 = vector.broadcast %cst_31 : f32 to vector<8x256xf32>
    %48 = arith.maximumf %47, %46 : vector<8x256xf32>
    %49 = vector.broadcast %cst_32 : f32 to vector<8x256xf32>
    %50 = arith.minimumf %49, %48 : vector<8x256xf32>
    %c0_33 = arith.constant 0 : index
    %c0_34 = arith.constant 0 : index
    %51 = vector.load %arg10[%c0_33, %c0_34] : memref<8x256xf32, #tpu.memory_space<vmem>>, vector<8x256xf32>
    tpu.vector_store %arg10[%c0_33, %c0_34], %50 {strides = array<i32>} : memref<8x256xf32, #tpu.memory_space<vmem>>, vector<8x256xf32>,
    return
  }
  func.func @transform_0(%arg0: i32) -> (i32, i32) {
    %c0_i32 = arith.constant 0 : i32
    %c0_i32_0 = arith.constant 0 : i32
    return %arg0, %c0_i32 : i32, i32
  }
  func.func @transform_1(%arg0: i32) -> (i32, i32) {
    %c0_i32 = arith.constant 0 : i32
    %c0_i32_0 = arith.constant 0 : i32
    %c0_i32_1 = arith.constant 0 : i32
    return %c0_i32, %c0_i32_0 : i32, i32
  }
  func.func @transform_2(%arg0: i32) -> (i32, i32) {
    %c0_i32 = arith.constant 0 : i32
    %c0_i32_0 = arith.constant 0 : i32
    %c0_i32_1 = arith.constant 0 : i32
    return %c0_i32, %c0_i32_0 : i32, i32
  }
  func.func @transform_3(%arg0: i32) -> (i32, i32) {
    %c0_i32 = arith.constant 0 : i32
    %c0_i32_0 = arith.constant 0 : i32
    %c0_i32_1 = arith.constant 0 : i32
    return %c0_i32, %c0_i32_0 : i32, i32
  }
  func.func @transform_4(%arg0: i32) -> (i32, i32) {
    %c0_i32 = arith.constant 0 : i32
    %c0_i32_0 = arith.constant 0 : i32
    %c0_i32_1 = arith.constant 0 : i32
    return %c0_i32, %c0_i32_0 : i32, i32
  }
  func.func @transform_5(%arg0: i32) -> (i32, i32) {
    %c0_i32 = arith.constant 0 : i32
    %c0_i32_0 = arith.constant 0 : i32
    %c0_i32_1 = arith.constant 0 : i32
    return %c0_i32, %c0_i32_0 : i32, i32
  }
  func.func @transform_6(%arg0: i32) -> (i32, i32) {
    %c0_i32 = arith.constant 0 : i32
    %c0_i32_0 = arith.constant 0 : i32
    %c0_i32_1 = arith.constant 0 : i32
    return %c0_i32, %c0_i32_0 : i32, i32
  }
  func.func @transform_7(%arg0: i32) -> (i32, i32) {
    %c0_i32 = arith.constant 0 : i32
    %c0_i32_0 = arith.constant 0 : i32
    %c0_i32_1 = arith.constant 0 : i32
    return %c0_i32, %c0_i32_0 : i32, i32
  }
  func.func @transform_8(%arg0: i32) -> (i32, i32) {
    %c0_i32 = arith.constant 0 : i32
    %c0_i32_0 = arith.constant 0 : i32
    %c0_i32_1 = arith.constant 0 : i32
    return %c0_i32, %c0_i32_0 : i32, i32
  }
  func.func @transform_9(%arg0: i32) -> (i32, i32) {
    %c0_i32 = arith.constant 0 : i32
    %c0_i32_0 = arith.constant 0 : i32
    return %arg0, %c0_i32 : i32, i32
  }
}

</mosaic_0001>

<llo_original>
// kernel: tile.3
$region0: #{tile.3}
  %s0 = inlined_call_operand.vmem [shape: f32[2,1,1,4], index: 0, kind: input, shape index: {}]
  %s1 = inlined_call_operand.vmem [shape: f32[8,1], index: 1, kind: output, shape index: {}]
  $region1: #{tile.3} parent=0
    #allocation0 [shape = 'u8[4096]{0}', space=vmem, size = 0x1000, scoped, tag = 'scoped mem for input reshape']
    %s3 = sshll.u32 1, 2
    %s4 = ssub.s32 %s3, 1
    %v5 = vld [vmem:[%s0] sm:%s4]
    %6 = vst [vmem:[#allocation0] sm:%s4] %v5
    %v7 = vld [vmem:[#allocation0] sm:$0x3]
    %vm8 = vcmask 7168
    %9 = vst.msk [vmem:[%s1] ss:$4 sm:$0x3] %vm8, %v7
    %v10 = vld [vmem:[#allocation0] sm:$0x3]
    %11 = vrot.lane.b32.xlu0 %v10, 127
    %v12 = vpop.permute.xlu0 %11
    %vm13 = vcmask 7168
    %s14 = scalar_lea.vmem %s1, 1
    %15 = vst.msk [vmem:[%s14] ss:$4 sm:$0x3] %vm13, %v12
    %v16 = vld [vmem:[#allocation0] sm:$0x3]
    %17 = vrot.lane.b32.xlu0 %v16, 126
    %v18 = vpop.permute.xlu0 %17
    %vm19 = vcmask 7168
    %s20 = scalar_lea.vmem %s1, 2
    %21 = vst.msk [vmem:[%s20] ss:$4 sm:$0x3] %vm19, %v18
    %v22 = vld [vmem:[#allocation0] sm:$0x3]
    %23 = vrot.lane.b32.xlu0 %v22, 125
    %v24 = vpop.permute.xlu0 %23
    %vm25 = vcmask 7168
    %s26 = scalar_lea.vmem %s1, 3
    %27 = vst.msk [vmem:[%s26] ss:$4 sm:$0x3] %vm25, %v24

// kernel: tile.23
$region0: #{tile.23}
  #allocation0 [shape = 's32[1]{0}', space=sflag, size = 0x4, scoped, tag = 'scoped memory for tile.23']
  %s0 = inlined_call_operand.vmem [shape: f32[4], index: 0, kind: input, shape index: {}]
  %s1 = inlined_call_operand.vmem [shape: f32[2,1,1,4], index: 1, kind: output, shape index: {}]
  // Predicated region
  $region2: #{tile.23} parent=0 // pred_check
    _
  $region3: #{tile.23} parent=0 // pred_check_branch
    %3 = sbr.rel (0) target = $region5
  $region4: #{tile.23} parent=0 // pred_region
    _
  $region5: #{tile.23} parent=0 // pred_fallthru
    _
  %v4 = vld [vmem:[%s0] ss:$0 sm:$0xff]
  %5 = vst [vmem:[%s1] sm:$0x3] %v4

// kernel: anb_forward.1
$region0: #{anb_forward.1}
  #allocation0 [shape = 'u32[]', space=smem, size = 0x4, offset = 0x4, fixed_abs, tag = 'smem constant byte address 0x4 - core index']
  #allocation1 [shape = 'u32[144,128]{1,0:T(1,128)}', space=vmem, size = 0x12000, scoped, tag = 'internal scratch']
  %s0 = inlined_call_operand.vmem [shape: f32[8,256], index: 0, kind: input, shape index: {}]
  %s1 = inlined_call_operand.vmem [shape: f32[8,8], index: 1, kind: input, shape index: {}]
  %s2 = inlined_call_operand.vmem [shape: f32[8,1], index: 2, kind: input, shape index: {}]
  %s3 = inlined_call_operand.vmem [shape: f32[8,8], index: 3, kind: input, shape index: {}]
  %s4 = inlined_call_operand.vmem [shape: f32[8,1], index: 4, kind: input, shape index: {}]
  %s5 = inlined_call_operand.vmem [shape: f32[8,8], index: 5, kind: input, shape index: {}]
  %s6 = inlined_call_operand.vmem [shape: f32[8,1], index: 6, kind: input, shape index: {}]
  %s7 = inlined_call_operand.vmem [shape: f32[8,8], index: 7, kind: input, shape index: {}]
  %s8 = inlined_call_operand.vmem [shape: f32[8,1], index: 8, kind: input, shape index: {}]
  %s9 = inlined_call_operand.vmem [shape: f32[8,256], index: 9, kind: output, shape index: {}]
  %s10 = sld [smem:[#allocation0]]
  $region46: #{anb_forward.1} parent=0
    _
  %s12 = ssub.s32 1, %s10
  %s13 = scalar_select 0, %s12, %s10
  // Predicated region
  $region2: #{anb_forward.1} parent=0 // pred_check
    _
  $region3: #{anb_forward.1} parent=0 // pred_check_branch
    %15 = sbr.rel (0) target = $region5
  $region4: #{anb_forward.1} parent=0 // pred_region
    _
  $region5: #{anb_forward.1} parent=0 // pred_fallthru
    _
  // Predicated region
  $region6: #{anb_forward.1} parent=0 // pred_check
    _
  $region7: #{anb_forward.1} parent=0 // pred_check_branch
    %17 = sbr.rel (0) target = $region9
  $region8: #{anb_forward.1} parent=0 // pred_region
    _
  $region9: #{anb_forward.1} parent=0 // pred_fallthru
    _
  // Predicated region
  $region10: #{anb_forward.1} parent=0 // pred_check
    _
  $region11: #{anb_forward.1} parent=0 // pred_check_branch
    %19 = sbr.rel (0) target = $region13
  $region12: #{anb_forward.1} parent=0 // pred_region
    _
  $region13: #{anb_forward.1} parent=0 // pred_fallthru
    _
  // Predicated region
  $region14: #{anb_forward.1} parent=0 // pred_check
    _
  $region15: #{anb_forward.1} parent=0 // pred_check_branch
    %21 = sbr.rel (0) target = $region17
  $region16: #{anb_forward.1} parent=0 // pred_region
    _
  $region17: #{anb_forward.1} parent=0 // pred_fallthru
    _
  // Predicated region
  $region18: #{anb_forward.1} parent=0 // pred_check
    _
  $region19: #{anb_forward.1} parent=0 // pred_check_branch
    %23 = sbr.rel (0) target = $region21
  $region20: #{anb_forward.1} parent=0 // pred_region
    _
  $region21: #{anb_forward.1} parent=0 // pred_fallthru
    _
  // Predicated region
  $region22: #{anb_forward.1} parent=0 // pred_check
    _
  $region23: #{anb_forward.1} parent=0 // pred_check_branch
    %25 = sbr.rel (0) target = $region25
  $region24: #{anb_forward.1} parent=0 // pred_region
    _
  $region25: #{anb_forward.1} parent=0 // pred_fallthru
    _
  // Predicated region
  $region26: #{anb_forward.1} parent=0 // pred_check
    _
  $region27: #{anb_forward.1} parent=0 // pred_check_branch
    %27 = sbr.rel (0) target = $region29
  $region28: #{anb_forward.1} parent=0 // pred_region
    _
  $region29: #{anb_forward.1} parent=0 // pred_fallthru
    _
  // Predicated region
  $region30: #{anb_forward.1} parent=0 // pred_check
    _
  $region31: #{anb_forward.1} parent=0 // pred_check_branch
    %29 = sbr.rel (0) target = $region33
  $region32: #{anb_forward.1} parent=0 // pred_region
    _
  $region33: #{anb_forward.1} parent=0 // pred_fallthru
    _
  // Predicated region
  $region34: #{anb_forward.1} parent=0 // pred_check
    _
  $region35: #{anb_forward.1} parent=0 // pred_check_branch
    %31 = sbr.rel (0) target = $region37
  $region36: #{anb_forward.1} parent=0 // pred_region
    _
  $region37: #{anb_forward.1} parent=0 // pred_fallthru
    _
  %v32 = vld [vmem:[%s0] sm:$0xff]
  %v33 = vld [vmem:[%s0 + $0x8] sm:$0xff]
  %v34 = vmax.f32 %v32, %v33
  %35 = vmax.xlane.f32.xlu0 %v34
  %v36 = vpop.xlane.xlu0 %35
  %v37 = vmin.f32 %v32, %v33
  %38 = vmin.xlane.f32.xlu0 %v37
  %v39 = vpop.xlane.xlu0 %38
  %v40 = vld [vmem:[%s1] sm:$0xff]
  %v41 = vld [vmem:[%s2] sm:$0xff]
  %vm42 = vcmask 64512
  %v44 = vsel %vm42, %v40, 0
  %46 = vmatprep.subr.mxu0 0.0
  %47 = vmatpush1.msra.mxu0 0.0
  %48 = vmatprep.subr.mxu0 0.0
  %49 = vmatpush1.msra.mxu0 0.0
  %50 = vmatprep.subr.mxu0 0.0
  %51 = vmatpush1.msra.mxu0 0.0
  %52 = vmatprep.subr.mxu0 0.0
  %53 = vmatpush1.msra.mxu0 0.0
  %54 = vmatprep.subr.mxu0 0.0
  %55 = vmatpush1.msra.mxu0 0.0
  %56 = vmatprep.subr.mxu0 0.0
  %57 = vmatpush1.msra.mxu0 0.0
  %58 = vmatprep.subr.mxu0 0.0
  %59 = vmatpush1.msra.mxu0 0.0
  %60 = vmatprep.subr.mxu0 0.0
  %61 = vmatpush1.msra.mxu0 0.0
  %62 = vmatprep.subr.mxu0 0.0
  %63 = vmatpush1.msra.mxu0 0.0
  %64 = vmatprep.subr.mxu0 0.0
  %65 = vmatpush1.msra.mxu0 0.0
  %66 = vmatprep.subr.mxu0 0.0
  %67 = vmatpush1.msra.mxu0 0.0
  %68 = vmatprep.subr.mxu0 0.0
  %69 = vmatpush1.msra.mxu0 0.0
  %70 = vmatprep.subr.mxu0 0.0
  %71 = vmatpush1.msra.mxu0 0.0
  %72 = vmatprep.subr.mxu0 0.0
  %73 = vmatpush1.msra.mxu0 0.0
  %74 = vmatprep.subr.mxu0 0.0
  %75 = vmatpush1.msra.mxu0 0.0
  %76 = vmatprep.subr.mxu0 0.0
  %v77 = vand.u32 %v36, 4294901760
  %78 = vmatpush1.msra.mxu0 %v77
  %79 = vmatprep.subr.mxu0 0.0
  %80 = vmatpush2.msra.mxu0 0.0
  %81 = vmatprep.subr.mxu0 0.0
  %82 = vmatpush2.msra.mxu0 0.0
  %83 = vmatprep.subr.mxu0 0.0
  %84 = vmatpush2.msra.mxu0 0.0
  %85 = vmatprep.subr.mxu0 0.0
  %86 = vmatpush2.msra.mxu0 0.0
  %87 = vmatprep.subr.mxu0 0.0
  %88 = vmatpush2.msra.mxu0 0.0
  %89 = vmatprep.subr.mxu0 0.0
  %90 = vmatpush2.msra.mxu0 0.0
  %91 = vmatprep.subr.mxu0 0.0
  %92 = vmatpush2.msra.mxu0 0.0
  %93 = vmatprep.subr.mxu0 0.0
  %94 = vmatpush2.msra.mxu0 0.0
  %95 = vmatprep.subr.mxu0 0.0
  %96 = vmatpush2.msra.mxu0 0.0
  %97 = vmatprep.subr.mxu0 0.0
  %98 = vmatpush2.msra.mxu0 0.0
  %99 = vmatprep.subr.mxu0 0.0
  %100 = vmatpush2.msra.mxu0 0.0
  %101 = vmatprep.subr.mxu0 0.0
  %102 = vmatpush2.msra.mxu0 0.0
  %103 = vmatprep.subr.mxu0 0.0
  %104 = vmatpush2.msra.mxu0 0.0
  %105 = vmatprep.subr.mxu0 0.0
  %106 = vmatpush2.msra.mxu0 0.0
  %107 = vmatprep.subr.mxu0 0.0
  %108 = vmatpush2.msra.mxu0 0.0
  %109 = vmatprep.subr.mxu0 0.0
  %110 = vmatpush2.msra.mxu0 0.0
  %111 = vmatprep.mubr.f32.mxu0 0.0
  %v112 = vand.u32 %v44, 4294901760
  %v113 = vsub.f32 %v44, %v112
  %v114 = vand.u32 %v113, 4294901760
  %v115 = vsub.f32 %v113, %v114
  %v116 = vand.u32 %v115, 4294901760
  %117 = vmatmul.mubr.f32.gmra.mxu0 %v116
  %v118 = vpop.f32.mrf.mxu0
  %v119 = vadd.f32 %v41, %v118
  %v120 = vpop.f32.mrf.mxu0
  %121 = vdwg.mxu0
  %122 = vmatprep.subr.mxu0 0.0
  %123 = vmatpush1.msra.mxu0 0.0
  %124 = vmatprep.subr.mxu0 0.0
  %125 = vmatpush1.msra.mxu0 0.0
  %126 = vmatprep.subr.mxu0 0.0
  %127 = vmatpush1.msra.mxu0 0.0
  %128 = vmatprep.subr.mxu0 0.0
  %129 = vmatpush1.msra.mxu0 0.0
  %130 = vmatprep.subr.mxu0 0.0
  %131 = vmatpush1.msra.mxu0 0.0
  %132 = vmatprep.subr.mxu0 0.0
  %133 = vmatpush1.msra.mxu0 0.0
  %134 = vmatprep.subr.mxu0 0.0
  %135 = vmatpush1.msra.mxu0 0.0
  %136 = vmatprep.subr.mxu0 0.0
  %137 = vmatpush1.msra.mxu0 0.0
  %138 = vmatprep.subr.mxu0 0.0
  %139 = vmatpush1.msra.mxu0 0.0
  %140 = vmatprep.subr.mxu0 0.0
  %141 = vmatpush1.msra.mxu0 0.0
  %142 = vmatprep.subr.mxu0 0.0
  %143 = vmatpush1.msra.mxu0 0.0
  %144 = vmatprep.subr.mxu0 0.0
  %145 = vmatpush1.msra.mxu0 0.0
  %146 = vmatprep.subr.mxu0 0.0
  %147 = vmatpush1.msra.mxu0 0.0
  %148 = vmatprep.subr.mxu0 0.0
  %149 = vmatpush1.msra.mxu0 0.0
  %150 = vmatprep.subr.mxu0 0.0
  %151 = vmatpush1.msra.mxu0 0.0
  %152 = vmatprep.subr.mxu0 0.0
  %v153 = vand.u32 %v36, 4294901760
  %v154 = vsub.f32 %v36, %v153
  %v155 = vand.u32 %v154, 4294901760
  %v156 = vsub.f32 %v154, %v155
  %v157 = vand.u32 %v156, 4294901760
  %158 = vmatpush1.msra.mxu0 %v157
  %159 = vmatprep.subr.mxu0 0.0
  %160 = vmatpush2.msra.mxu0 0.0
  %161 = vmatprep.subr.mxu0 0.0
  %162 = vmatpush2.msra.mxu0 0.0
  %163 = vmatprep.subr.mxu0 0.0
  %164 = vmatpush2.msra.mxu0 0.0
  %165 = vmatprep.subr.mxu0 0.0
  %166 = vmatpush2.msra.mxu0 0.0
  %167 = vmatprep.subr.mxu0 0.0
  %168 = vmatpush2.msra.mxu0 0.0
  %169 = vmatprep.subr.mxu0 0.0
  %170 = vmatpush2.msra.mxu0 0.0
  %171 = vmatprep.subr.mxu0 0.0
  %172 = vmatpush2.msra.mxu0 0.0
  %173 = vmatprep.subr.mxu0 0.0
  %174 = vmatpush2.msra.mxu0 0.0
  %175 = vmatprep.subr.mxu0 0.0
  %176 = vmatpush2.msra.mxu0 0.0
  %177 = vmatprep.subr.mxu0 0.0
  %178 = vmatpush2.msra.mxu0 0.0
  %179 = vmatprep.subr.mxu0 0.0
  %180 = vmatpush2.msra.mxu0 0.0
  %181 = vmatprep.subr.mxu0 0.0
  %182 = vmatpush2.msra.mxu0 0.0
  %183 = vmatprep.subr.mxu0 0.0
  %184 = vmatpush2.msra.mxu0 0.0
  %185 = vmatprep.subr.mxu0 0.0
  %186 = vmatpush2.msra.mxu0 0.0
  %187 = vmatprep.subr.mxu0 0.0
  %188 = vmatpush2.msra.mxu0 0.0
  %189 = vmatprep.subr.mxu0 0.0
  %190 = vmatpush2.msra.mxu0 0.0
  %191 = vmatprep.mubr.f32.mxu0 0.0
  %v192 = vand.u32 %v44, 4294901760
  %193 = vmatmul.mubr.f32.gmra.mxu0 %v192
  %v194 = vpop.f32.mrf.mxu0
  %v195 = vadd.f32 %v119, %v194
  %v196 = vpop.f32.mrf.mxu0
  %197 = vdwg.mxu0
  %198 = vmatprep.subr.mxu0 0.0
  %199 = vmatpush1.msra.mxu0 0.0
  %200 = vmatprep.subr.mxu0 0.0
  %201 = vmatpush1.msra.mxu0 0.0
  %202 = vmatprep.subr.mxu0 0.0
  %203 = vmatpush1.msra.mxu0 0.0
  %204 = vmatprep.subr.mxu0 0.0
  %205 = vmatpush1.msra.mxu0 0.0
  %206 = vmatprep.subr.mxu0 0.0
  %207 = vmatpush1.msra.mxu0 0.0
  %208 = vmatprep.subr.mxu0 0.0
  %209 = vmatpush1.msra.mxu0 0.0
  %210 = vmatprep.subr.mxu0 0.0
  %211 = vmatpush1.msra.mxu0 0.0
  %212 = vmatprep.subr.mxu0 0.0
  %213 = vmatpush1.msra.mxu0 0.0
  %214 = vmatprep.subr.mxu0 0.0
  %215 = vmatpush1.msra.mxu0 0.0
  %216 = vmatprep.subr.mxu0 0.0
  %217 = vmatpush1.msra.mxu0 0.0
  %218 = vmatprep.subr.mxu0 0.0
  %219 = vmatpush1.msra.mxu0 0.0
  %220 = vmatprep.subr.mxu0 0.0
  %221 = vmatpush1.msra.mxu0 0.0
  %222 = vmatprep.subr.mxu0 0.0
  %223 = vmatpush1.msra.mxu0 0.0
  %224 = vmatprep.subr.mxu0 0.0
  %225 = vmatpush1.msra.mxu0 0.0
  %226 = vmatprep.subr.mxu0 0.0
  %227 = vmatpush1.msra.mxu0 0.0
  %228 = vmatprep.subr.mxu0 0.0
  %v229 = vand.u32 %v36, 4294901760
  %v230 = vsub.f32 %v36, %v229
  %231 = vmatpush1.msra.mxu0 %v230
  %232 = vmatprep.subr.mxu0 0.0
  %233 = vmatpush2.msra.mxu0 0.0
  %234 = vmatprep.subr.mxu0 0.0
  %235 = vmatpush2.msra.mxu0 0.0
  %236 = vmatprep.subr.mxu0 0.0
  %237 = vmatpush2.msra.mxu0 0.0
  %238 = vmatprep.subr.mxu0 0.0
  %239 = vmatpush2.msra.mxu0 0.0
  %240 = vmatprep.subr.mxu0 0.0
  %241 = vmatpush2.msra.mxu0 0.0
  %242 = vmatprep.subr.mxu0 0.0
  %243 = vmatpush2.msra.mxu0 0.0
  %244 = vmatprep.subr.mxu0 0.0
  %245 = vmatpush2.msra.mxu0 0.0
  %246 = vmatprep.subr.mxu0 0.0
  %247 = vmatpush2.msra.mxu0 0.0
  %248 = vmatprep.subr.mxu0 0.0
  %249 = vmatpush2.msra.mxu0 0.0
  %250 = vmatprep.subr.mxu0 0.0
  %251 = vmatpush2.msra.mxu0 0.0
  %252 = vmatprep.subr.mxu0 0.0
  %253 = vmatpush2.msra.mxu0 0.0
  %254 = vmatprep.subr.mxu0 0.0
  %255 = vmatpush2.msra.mxu0 0.0
  %256 = vmatprep.subr.mxu0 0.0
  %257 = vmatpush2.msra.mxu0 0.0
  %258 = vmatprep.subr.mxu0 0.0
  %259 = vmatpush2.msra.mxu0 0.0
  %260 = vmatprep.subr.mxu0 0.0
  %261 = vmatpush2.msra.mxu0 0.0
  %262 = vmatprep.subr.mxu0 0.0
  %263 = vmatpush2.msra.mxu0 0.0
  %264 = vmatprep.mubr.f32.mxu0 0.0
  %v265 = vand.u32 %v44, 4294901760
  %v266 = vsub.f32 %v44, %v265
  %267 = vmatmul.mubr.f32.gmra.mxu0 %v266
  %v268 = vpop.f32.mrf.mxu0
  %v269 = vadd.f32 %v195, %v268
  %v270 = vpop.f32.mrf.mxu0
  %271 = vdwg.mxu0
  %272 = vmatprep.subr.mxu0 0.0
  %273 = vmatpush1.msra.mxu0 0.0
  %274 = vmatprep.subr.mxu0 0.0
  %275 = vmatpush1.msra.mxu0 0.0
  %276 = vmatprep.subr.mxu0 0.0
  %277 = vmatpush1.msra.mxu0 0.0
  %278 = vmatprep.subr.mxu0 0.0
  %279 = vmatpush1.msra.mxu0 0.0
  %280 = vmatprep.subr.mxu0 0.0
  %281 = vmatpush1.msra.mxu0 0.0
  %282 = vmatprep.subr.mxu0 0.0
  %283 = vmatpush1.msra.mxu0 0.0
  %284 = vmatprep.subr.mxu0 0.0
  %285 = vmatpush1.msra.mxu0 0.0
  %286 = vmatprep.subr.mxu0 0.0
  %287 = vmatpush1.msra.mxu0 0.0
  %288 = vmatprep.subr.mxu0 0.0
  %289 = vmatpush1.msra.mxu0 0.0
  %290 = vmatprep.subr.mxu0 0.0
  %291 = vmatpush1.msra.mxu0 0.0
  %292 = vmatprep.subr.mxu0 0.0
  %293 = vmatpush1.msra.mxu0 0.0
  %294 = vmatprep.subr.mxu0 0.0
  %295 = vmatpush1.msra.mxu0 0.0
  %296 = vmatprep.subr.mxu0 0.0
  %297 = vmatpush1.msra.mxu0 0.0
  %298 = vmatprep.subr.mxu0 0.0
  %299 = vmatpush1.msra.mxu0 0.0
  %300 = vmatprep.subr.mxu0 0.0
  %301 = vmatpush1.msra.mxu0 0.0
  %302 = vmatprep.subr.mxu0 0.0
  %v303 = vand.u32 %v36, 4294901760
  %304 = vmatpush1.msra.mxu0 %v303
  %305 = vmatprep.subr.mxu0 0.0
  %306 = vmatpush2.msra.mxu0 0.0
  %307 = vmatprep.subr.mxu0 0.0
  %308 = vmatpush2.msra.mxu0 0.0
  %309 = vmatprep.subr.mxu0 0.0
  %310 = vmatpush2.msra.mxu0 0.0
  %311 = vmatprep.subr.mxu0 0.0
  %312 = vmatpush2.msra.mxu0 0.0
  %313 = vmatprep.subr.mxu0 0.0
  %314 = vmatpush2.msra.mxu0 0.0
  %315 = vmatprep.subr.mxu0 0.0
  %316 = vmatpush2.msra.mxu0 0.0
  %317 = vmatprep.subr.mxu0 0.0
  %318 = vmatpush2.msra.mxu0 0.0
  %319 = vmatprep.subr.mxu0 0.0
  %320 = vmatpush2.msra.mxu0 0.0
  %321 = vmatprep.subr.mxu0 0.0
  %322 = vmatpush2.msra.mxu0 0.0
  %323 = vmatprep.subr.mxu0 0.0
  %324 = vmatpush2.msra.mxu0 0.0
  %325 = vmatprep.subr.mxu0 0.0
  %326 = vmatpush2.msra.mxu0 0.0
  %327 = vmatprep.subr.mxu0 0.0
  %328 = vmatpush2.msra.mxu0 0.0
  %329 = vmatprep.subr.mxu0 0.0
  %330 = vmatpush2.msra.mxu0 0.0
  %331 = vmatprep.subr.mxu0 0.0
  %332 = vmatpush2.msra.mxu0 0.0
  %333 = vmatprep.subr.mxu0 0.0
  %334 = vmatpush2.msra.mxu0 0.0
  %335 = vmatprep.subr.mxu0 0.0
  %336 = vmatpush2.msra.mxu0 0.0
  %337 = vmatprep.mubr.f32.mxu0 0.0
  %v338 = vand.u32 %v44, 4294901760
  %v339 = vsub.f32 %v44, %v338
  %v340 = vand.u32 %v339, 4294901760
  %341 = vmatmul.mubr.f32.gmra.mxu0 %v340
  %v342 = vpop.f32.mrf.mxu0
  %v343 = vadd.f32 %v269, %v342
  %v344 = vpop.f32.mrf.mxu0
  %345 = vdwg.mxu0
  %346 = vmatprep.subr.mxu0 0.0
  %347 = vmatpush1.msra.mxu0 0.0
  %348 = vmatprep.subr.mxu0 0.0
  %349 = vmatpush1.msra.mxu0 0.0
  %350 = vmatprep.subr.mxu0 0.0
  %351 = vmatpush1.msra.mxu0 0.0
  %352 = vmatprep.subr.mxu0 0.0
  %353 = vmatpush1.msra.mxu0 0.0
  %354 = vmatprep.subr.mxu0 0.0
  %355 = vmatpush1.msra.mxu0 0.0
  %356 = vmatprep.subr.mxu0 0.0
  %357 = vmatpush1.msra.mxu0 0.0
  %358 = vmatprep.subr.mxu0 0.0
  %359 = vmatpush1.msra.mxu0 0.0
  %360 = vmatprep.subr.mxu0 0.0
  %361 = vmatpush1.msra.mxu0 0.0
  %362 = vmatprep.subr.mxu0 0.0
  %363 = vmatpush1.msra.mxu0 0.0
  %364 = vmatprep.subr.mxu0 0.0
  %365 = vmatpush1.msra.mxu0 0.0
  %366 = vmatprep.subr.mxu0 0.0
  %367 = vmatpush1.msra.mxu0 0.0
  %368 = vmatprep.subr.mxu0 0.0
  %369 = vmatpush1.msra.mxu0 0.0
  %370 = vmatprep.subr.mxu0 0.0
  %371 = vmatpush1.msra.mxu0 0.0
  %372 = vmatprep.subr.mxu0 0.0
  %373 = vmatpush1.msra.mxu0 0.0
  %374 = vmatprep.subr.mxu0 0.0
  %375 = vmatpush1.msra.mxu0 0.0
  %376 = vmatprep.subr.mxu0 0.0
  %v377 = vand.u32 %v36, 4294901760
  %v378 = vsub.f32 %v36, %v377
  %v379 = vand.u32 %v378, 4294901760
  %380 = vmatpush1.msra.mxu0 %v379
  %381 = vmatprep.subr.mxu0 0.0
  %382 = vmatpush2.msra.mxu0 0.0
  %383 = vmatprep.subr.mxu0 0.0
  %384 = vmatpush2.msra.mxu0 0.0
  %385 = vmatprep.subr.mxu0 0.0
  %386 = vmatpush2.msra.mxu0 0.0
  %387 = vmatprep.subr.mxu0 0.0
  %388 = vmatpush2.msra.mxu0 0.0
  %389 = vmatprep.subr.mxu0 0.0
  %390 = vmatpush2.msra.mxu0 0.0
  %391 = vmatprep.subr.mxu0 0.0
  %392 = vmatpush2.msra.mxu0 0.0
  %393 = vmatprep.subr.mxu0 0.0
  %394 = vmatpush2.msra.mxu0 0.0
  %395 = vmatprep.subr.mxu0 0.0
  %396 = vmatpush2.msra.mxu0 0.0
  %397 = vmatprep.subr.mxu0 0.0
  %398 = vmatpush2.msra.mxu0 0.0
  %399 = vmatprep.subr.mxu0 0.0
  %400 = vmatpush2.msra.mxu0 0.0
  %401 = vmatprep.subr.mxu0 0.0
  %402 = vmatpush2.msra.mxu0 0.0
  %403 = vmatprep.subr.mxu0 0.0
  %404 = vmatpush2.msra.mxu0 0.0
  %405 = vmatprep.subr.mxu0 0.0
  %406 = vmatpush2.msra.mxu0 0.0
  %407 = vmatprep.subr.mxu0 0.0
  %408 = vmatpush2.msra.mxu0 0.0
  %409 = vmatprep.subr.mxu0 0.0
  %410 = vmatpush2.msra.mxu0 0.0
  %411 = vmatprep.subr.mxu0 0.0
  %412 = vmatpush2.msra.mxu0 0.0
  %413 = vmatprep.mubr.f32.mxu0 0.0
  %v414 = vand.u32 %v44, 4294901760
  %415 = vmatmul.mubr.f32.gmra.mxu0 %v414
  %v416 = vpop.f32.mrf.mxu0
  %v417 = vadd.f32 %v343, %v416
  %v418 = vpop.f32.mrf.mxu0
  %419 = vdwg.mxu0
  %420 = vmatprep.subr.mxu0 0.0
  %421 = vmatpush1.msra.mxu0 0.0
  %422 = vmatprep.subr.mxu0 0.0
  %423 = vmatpush1.msra.mxu0 0.0
  %424 = vmatprep.subr.mxu0 0.0
  %425 = vmatpush1.msra.mxu0 0.0
  %426 = vmatprep.subr.mxu0 0.0
  %427 = vmatpush1.msra.mxu0 0.0
  %428 = vmatprep.subr.mxu0 0.0
  %429 = vmatpush1.msra.mxu0 0.0
  %430 = vmatprep.subr.mxu0 0.0
  %431 = vmatpush1.msra.mxu0 0.0
  %432 = vmatprep.subr.mxu0 0.0
  %433 = vmatpush1.msra.mxu0 0.0
  %434 = vmatprep.subr.mxu0 0.0
  %435 = vmatpush1.msra.mxu0 0.0
  %436 = vmatprep.subr.mxu0 0.0
  %437 = vmatpush1.msra.mxu0 0.0
  %438 = vmatprep.subr.mxu0 0.0
  %439 = vmatpush1.msra.mxu0 0.0
  %440 = vmatprep.subr.mxu0 0.0
  %441 = vmatpush1.msra.mxu0 0.0
  %442 = vmatprep.subr.mxu0 0.0
  %443 = vmatpush1.msra.mxu0 0.0
  %444 = vmatprep.subr.mxu0 0.0
  %445 = vmatpush1.msra.mxu0 0.0
  %446 = vmatprep.subr.mxu0 0.0
  %447 = vmatpush1.msra.mxu0 0.0
  %448 = vmatprep.subr.mxu0 0.0
  %449 = vmatpush1.msra.mxu0 0.0
  %450 = vmatprep.subr.mxu0 0.0
  %v451 = vand.u32 %v36, 4294901760
  %452 = vmatpush1.msra.mxu0 %v451
  %453 = vmatprep.subr.mxu0 0.0
  %454 = vmatpush2.msra.mxu0 0.0
  %455 = vmatprep.subr.mxu0 0.0
  %456 = vmatpush2.msra.mxu0 0.0
  %457 = vmatprep.subr.mxu0 0.0
  %458 = vmatpush2.msra.mxu0 0.0
  %459 = vmatprep.subr.mxu0 0.0
  %460 = vmatpush2.msra.mxu0 0.0
  %461 = vmatprep.subr.mxu0 0.0
  %462 = vmatpush2.msra.mxu0 0.0
  %463 = vmatprep.subr.mxu0 0.0
  %464 = vmatpush2.msra.mxu0 0.0
  %465 = vmatprep.subr.mxu0 0.0
  %466 = vmatpush2.msra.mxu0 0.0
  %467 = vmatprep.subr.mxu0 0.0
  %468 = vmatpush2.msra.mxu0 0.0
  %469 = vmatprep.subr.mxu0 0.0
  %470 = vmatpush2.msra.mxu0 0.0
  %471 = vmatprep.subr.mxu0 0.0
  %472 = vmatpush2.msra.mxu0 0.0
  %473 = vmatprep.subr.mxu0 0.0
  %474 = vmatpush2.msra.mxu0 0.0
  %475 = vmatprep.subr.mxu0 0.0
  %476 = vmatpush2.msra.mxu0 0.0
  %477 = vmatprep.subr.mxu0 0.0
  %478 = vmatpush2.msra.mxu0 0.0
  %479 = vmatprep.subr.mxu0 0.0
  %480 = vmatpush2.msra.mxu0 0.0
  %481 = vmatprep.subr.mxu0 0.0
  %482 = vmatpush2.msra.mxu0 0.0
  %483 = vmatprep.subr.mxu0 0.0
  %484 = vmatpush2.msra.mxu0 0.0
  %485 = vmatprep.mubr.f32.mxu0 0.0
  %v486 = vand.u32 %v44, 4294901760
  %487 = vmatmul.mubr.f32.gmra.mxu0 %v486
  %v488 = vpop.f32.mrf.mxu0
  %v489 = vadd.f32 %v417, %v488
  %v490 = vpop.f32.mrf.mxu0
  %491 = vdwg.mxu0
  %v492 = vmax.f32 %v489, 0.0
  %v493 = vld [vmem:[%s3] sm:$0xff]
  %v494 = vld [vmem:[%s4] sm:$0xff]
  %v496 = vsel %vm42, %v493, 0
  %498 = vmatprep.subr.mxu0 0.0
  %499 = vmatpush1.msra.mxu0 0.0
  %500 = vmatprep.subr.mxu0 0.0
  %501 = vmatpush1.msra.mxu0 0.0
  %502 = vmatprep.subr.mxu0 0.0
  %503 = vmatpush1.msra.mxu0 0.0
  %504 = vmatprep.subr.mxu0 0.0
  %505 = vmatpush1.msra.mxu0 0.0
  %506 = vmatprep.subr.mxu0 0.0
  %507 = vmatpush1.msra.mxu0 0.0
  %508 = vmatprep.subr.mxu0 0.0
  %509 = vmatpush1.msra.mxu0 0.0
  %510 = vmatprep.subr.mxu0 0.0
  %511 = vmatpush1.msra.mxu0 0.0
  %512 = vmatprep.subr.mxu0 0.0
  %513 = vmatpush1.msra.mxu0 0.0
  %514 = vmatprep.subr.mxu0 0.0
  %515 = vmatpush1.msra.mxu0 0.0
  %516 = vmatprep.subr.mxu0 0.0
  %517 = vmatpush1.msra.mxu0 0.0
  %518 = vmatprep.subr.mxu0 0.0
  %519 = vmatpush1.msra.mxu0 0.0
  %520 = vmatprep.subr.mxu0 0.0
  %521 = vmatpush1.msra.mxu0 0.0
  %522 = vmatprep.subr.mxu0 0.0
  %523 = vmatpush1.msra.mxu0 0.0
  %524 = vmatprep.subr.mxu0 0.0
  %525 = vmatpush1.msra.mxu0 0.0
  %526 = vmatprep.subr.mxu0 0.0
  %527 = vmatpush1.msra.mxu0 0.0
  %528 = vmatprep.subr.mxu0 0.0
  %v529 = vand.u32 %v492, 4294901760
  %530 = vmatpush1.msra.mxu0 %v529
  %531 = vmatprep.subr.mxu0 0.0
  %532 = vmatpush2.msra.mxu0 0.0
  %533 = vmatprep.subr.mxu0 0.0
  %534 = vmatpush2.msra.mxu0 0.0
  %535 = vmatprep.subr.mxu0 0.0
  %536 = vmatpush2.msra.mxu0 0.0
  %537 = vmatprep.subr.mxu0 0.0
  %538 = vmatpush2.msra.mxu0 0.0
  %539 = vmatprep.subr.mxu0 0.0
  %540 = vmatpush2.msra.mxu0 0.0
  %541 = vmatprep.subr.mxu0 0.0
  %542 = vmatpush2.msra.mxu0 0.0
  %543 = vmatprep.subr.mxu0 0.0
  %544 = vmatpush2.msra.mxu0 0.0
  %545 = vmatprep.subr.mxu0 0.0
  %546 = vmatpush2.msra.mxu0 0.0
  %547 = vmatprep.subr.mxu0 0.0
  %548 = vmatpush2.msra.mxu0 0.0
  %549 = vmatprep.subr.mxu0 0.0
  %550 = vmatpush2.msra.mxu0 0.0
  %551 = vmatprep.subr.mxu0 0.0
  %552 = vmatpush2.msra.mxu0 0.0
  %553 = vmatprep.subr.mxu0 0.0
  %554 = vmatpush2.msra.mxu0 0.0
  %555 = vmatprep.subr.mxu0 0.0
  %556 = vmatpush2.msra.mxu0 0.0
  %557 = vmatprep.subr.mxu0 0.0
  %558 = vmatpush2.msra.mxu0 0.0
  %559 = vmatprep.subr.mxu0 0.0
  %560 = vmatpush2.msra.mxu0 0.0
  %561 = vmatprep.subr.mxu0 0.0
  %562 = vmatpush2.msra.mxu0 0.0
  %563 = vmatprep.mubr.f32.mxu0 0.0
  %v564 = vand.u32 %v496, 4294901760
  %v565 = vsub.f32 %v496, %v564
  %v566 = vand.u32 %v565, 4294901760
  %v567 = vsub.f32 %v565, %v566
  %v568 = vand.u32 %v567, 4294901760
  %569 = vmatmul.mubr.f32.gmra.mxu0 %v568
  %v570 = vpop.f32.mrf.mxu0
  %v571 = vadd.f32 %v494, %v570
  %v572 = vpop.f32.mrf.mxu0
  %573 = vdwg.mxu0
  %574 = vmatprep.subr.mxu0 0.0
  %575 = vmatpush1.msra.mxu0 0.0
  %576 = vmatprep.subr.mxu0 0.0
  %577 = vmatpush1.msra.mxu0 0.0
  %578 = vmatprep.subr.mxu0 0.0
  %579 = vmatpush1.msra.mxu0 0.0
  %580 = vmatprep.subr.mxu0 0.0
  %581 = vmatpush1.msra.mxu0 0.0
  %582 = vmatprep.subr.mxu0 0.0
  %583 = vmatpush1.msra.mxu0 0.0
  %584 = vmatprep.subr.mxu0 0.0
  %585 = vmatpush1.msra.mxu0 0.0
  %586 = vmatprep.subr.mxu0 0.0
  %587 = vmatpush1.msra.mxu0 0.0
  %588 = vmatprep.subr.mxu0 0.0
  %589 = vmatpush1.msra.mxu0 0.0
  %590 = vmatprep.subr.mxu0 0.0
  %591 = vmatpush1.msra.mxu0 0.0
  %592 = vmatprep.subr.mxu0 0.0
  %593 = vmatpush1.msra.mxu0 0.0
  %594 = vmatprep.subr.mxu0 0.0
  %595 = vmatpush1.msra.mxu0 0.0
  %596 = vmatprep.subr.mxu0 0.0
  %597 = vmatpush1.msra.mxu0 0.0
  %598 = vmatprep.subr.mxu0 0.0
  %599 = vmatpush1.msra.mxu0 0.0
  %600 = vmatprep.subr.mxu0 0.0
  %601 = vmatpush1.msra.mxu0 0.0
  %602 = vmatprep.subr.mxu0 0.0
  %603 = vmatpush1.msra.mxu0 0.0
  %604 = vmatprep.subr.mxu0 0.0
  %v605 = vand.u32 %v492, 4294901760
  %v606 = vsub.f32 %v492, %v605
  %v607 = vand.u32 %v606, 4294901760
  %v608 = vsub.f32 %v606, %v607
  %v609 = vand.u32 %v608, 4294901760
  %610 = vmatpush1.msra.mxu0 %v609
  %611 = vmatprep.subr.mxu0 0.0
  %612 = vmatpush2.msra.mxu0 0.0
  %613 = vmatprep.subr.mxu0 0.0
  %614 = vmatpush2.msra.mxu0 0.0
  %615 = vmatprep.subr.mxu0 0.0
  %616 = vmatpush2.msra.mxu0 0.0
  %617 = vmatprep.subr.mxu0 0.0
  %618 = vmatpush2.msra.mxu0 0.0
  %619 = vmatprep.subr.mxu0 0.0
  %620 = vmatpush2.msra.mxu0 0.0
  %621 = vmatprep.subr.mxu0 0.0
  %622 = vmatpush2.msra.mxu0 0.0
  %623 = vmatprep.subr.mxu0 0.0
  %624 = vmatpush2.msra.mxu0 0.0
  %625 = vmatprep.subr.mxu0 0.0
  %626 = vmatpush2.msra.mxu0 0.0
  %627 = vmatprep.subr.mxu0 0.0
  %628 = vmatpush2.msra.mxu0 0.0
  %629 = vmatprep.subr.mxu0 0.0
  %630 = vmatpush2.msra.mxu0 0.0
  %631 = vmatprep.subr.mxu0 0.0
  %632 = vmatpush2.msra.mxu0 0.0
  %633 = vmatprep.subr.mxu0 0.0
  %634 = vmatpush2.msra.mxu0 0.0
  %635 = vmatprep.subr.mxu0 0.0
  %636 = vmatpush2.msra.mxu0 0.0
  %637 = vmatprep.subr.mxu0 0.0
  %638 = vmatpush2.msra.mxu0 0.0
  %639 = vmatprep.subr.mxu0 0.0
  %640 = vmatpush2.msra.mxu0 0.0
  %641 = vmatprep.subr.mxu0 0.0
  %642 = vmatpush2.msra.mxu0 0.0
  %643 = vmatprep.mubr.f32.mxu0 0.0
  %v644 = vand.u32 %v496, 4294901760
  %645 = vmatmul.mubr.f32.gmra.mxu0 %v644
  %v646 = vpop.f32.mrf.mxu0
  %v647 = vadd.f32 %v571, %v646
  %v648 = vpop.f32.mrf.mxu0
  %649 = vdwg.mxu0
  %650 = vmatprep.subr.mxu0 0.0
  %651 = vmatpush1.msra.mxu0 0.0
  %652 = vmatprep.subr.mxu0 0.0
  %653 = vmatpush1.msra.mxu0 0.0
  %654 = vmatprep.subr.mxu0 0.0
  %655 = vmatpush1.msra.mxu0 0.0
  %656 = vmatprep.subr.mxu0 0.0
  %657 = vmatpush1.msra.mxu0 0.0
  %658 = vmatprep.subr.mxu0 0.0
  %659 = vmatpush1.msra.mxu0 0.0
  %660 = vmatprep.subr.mxu0 0.0
  %661 = vmatpush1.msra.mxu0 0.0
  %662 = vmatprep.subr.mxu0 0.0
  %663 = vmatpush1.msra.mxu0 0.0
  %664 = vmatprep.subr.mxu0 0.0
  %665 = vmatpush1.msra.mxu0 0.0
  %666 = vmatprep.subr.mxu0 0.0
  %667 = vmatpush1.msra.mxu0 0.0
  %668 = vmatprep.subr.mxu0 0.0
  %669 = vmatpush1.msra.mxu0 0.0
  %670 = vmatprep.subr.mxu0 0.0
  %671 = vmatpush1.msra.mxu0 0.0
  %672 = vmatprep.subr.mxu0 0.0
  %673 = vmatpush1.msra.mxu0 0.0
  %674 = vmatprep.subr.mxu0 0.0
  %675 = vmatpush1.msra.mxu0 0.0
  %676 = vmatprep.subr.mxu0 0.0
  %677 = vmatpush1.msra.mxu0 0.0
  %678 = vmatprep.subr.mxu0 0.0
  %679 = vmatpush1.msra.mxu0 0.0
  %680 = vmatprep.subr.mxu0 0.0
  %v681 = vand.u32 %v492, 4294901760
  %v682 = vsub.f32 %v492, %v681
  %683 = vmatpush1.msra.mxu0 %v682
  %684 = vmatprep.subr.mxu0 0.0
  %685 = vmatpush2.msra.mxu0 0.0
  %686 = vmatprep.subr.mxu0 0.0
  %687 = vmatpush2.msra.mxu0 0.0
  %688 = vmatprep.subr.mxu0 0.0
  %689 = vmatpush2.msra.mxu0 0.0
  %690 = vmatprep.subr.mxu0 0.0
  %691 = vmatpush2.msra.mxu0 0.0
  %692 = vmatprep.subr.mxu0 0.0
  %693 = vmatpush2.msra.mxu0 0.0
  %694 = vmatprep.subr.mxu0 0.0
  %695 = vmatpush2.msra.mxu0 0.0
  %696 = vmatprep.subr.mxu0 0.0
  %697 = vmatpush2.msra.mxu0 0.0
  %698 = vmatprep.subr.mxu0 0.0
  %699 = vmatpush2.msra.mxu0 0.0
  %700 = vmatprep.subr.mxu0 0.0
  %701 = vmatpush2.msra.mxu0 0.0
  %702 = vmatprep.subr.mxu0 0.0
  %703 = vmatpush2.msra.mxu0 0.0
  %704 = vmatprep.subr.mxu0 0.0
  %705 = vmatpush2.msra.mxu0 0.0
  %706 = vmatprep.subr.mxu0 0.0
  %707 = vmatpush2.msra.mxu0 0.0
  %708 = vmatprep.subr.mxu0 0.0
  %709 = vmatpush2.msra.mxu0 0.0
  %710 = vmatprep.subr.mxu0 0.0
  %711 = vmatpush2.msra.mxu0 0.0
  %712 = vmatprep.subr.mxu0 0.0
  %713 = vmatpush2.msra.mxu0 0.0
  %714 = vmatprep.subr.mxu0 0.0
  %715 = vmatpush2.msra.mxu0 0.0
  %716 = vmatprep.mubr.f32.mxu0 0.0
  %v717 = vand.u32 %v496, 4294901760
  %v718 = vsub.f32 %v496, %v717
  %719 = vmatmul.mubr.f32.gmra.mxu0 %v718
  %v720 = vpop.f32.mrf.mxu0
  %v721 = vadd.f32 %v647, %v720
  %v722 = vpop.f32.mrf.mxu0
  %723 = vdwg.mxu0
  %724 = vmatprep.subr.mxu0 0.0
  %725 = vmatpush1.msra.mxu0 0.0
  %726 = vmatprep.subr.mxu0 0.0
  %727 = vmatpush1.msra.mxu0 0.0
  %728 = vmatprep.subr.mxu0 0.0
  %729 = vmatpush1.msra.mxu0 0.0
  %730 = vmatprep.subr.mxu0 0.0
  %731 = vmatpush1.msra.mxu0 0.0
  %732 = vmatprep.subr.mxu0 0.0
  %733 = vmatpush1.msra.mxu0 0.0
  %734 = vmatprep.subr.mxu0 0.0
  %735 = vmatpush1.msra.mxu0 0.0
  %736 = vmatprep.subr.mxu0 0.0
  %737 = vmatpush1.msra.mxu0 0.0
  %738 = vmatprep.subr.mxu0 0.0
  %739 = vmatpush1.msra.mxu0 0.0
  %740 = vmatprep.subr.mxu0 0.0
  %741 = vmatpush1.msra.mxu0 0.0
  %742 = vmatprep.subr.mxu0 0.0
  %743 = vmatpush1.msra.mxu0 0.0
  %744 = vmatprep.subr.mxu0 0.0
  %745 = vmatpush1.msra.mxu0 0.0
  %746 = vmatprep.subr.mxu0 0.0
  %747 = vmatpush1.msra.mxu0 0.0
  %748 = vmatprep.subr.mxu0 0.0
  %749 = vmatpush1.msra.mxu0 0.0
  %750 = vmatprep.subr.mxu0 0.0
  %751 = vmatpush1.msra.mxu0 0.0
  %752 = vmatprep.subr.mxu0 0.0
  %753 = vmatpush1.msra.mxu0 0.0
  %754 = vmatprep.subr.mxu0 0.0
  %v755 = vand.u32 %v492, 4294901760
  %756 = vmatpush1.msra.mxu0 %v755
  %757 = vmatprep.subr.mxu0 0.0
  %758 = vmatpush2.msra.mxu0 0.0
  %759 = vmatprep.subr.mxu0 0.0
  %760 = vmatpush2.msra.mxu0 0.0
  %761 = vmatprep.subr.mxu0 0.0
  %762 = vmatpush2.msra.mxu0 0.0
  %763 = vmatprep.subr.mxu0 0.0
  %764 = vmatpush2.msra.mxu0 0.0
  %765 = vmatprep.subr.mxu0 0.0
  %766 = vmatpush2.msra.mxu0 0.0
  %767 = vmatprep.subr.mxu0 0.0
  %768 = vmatpush2.msra.mxu0 0.0
  %769 = vmatprep.subr.mxu0 0.0
  %770 = vmatpush2.msra.mxu0 0.0
  %771 = vmatprep.subr.mxu0 0.0
  %772 = vmatpush2.msra.mxu0 0.0
  %773 = vmatprep.subr.mxu0 0.0
  %774 = vmatpush2.msra.mxu0 0.0
  %775 = vmatprep.subr.mxu0 0.0
  %776 = vmatpush2.msra.mxu0 0.0
  %777 = vmatprep.subr.mxu0 0.0
  %778 = vmatpush2.msra.mxu0 0.0
  %779 = vmatprep.subr.mxu0 0.0
  %780 = vmatpush2.msra.mxu0 0.0
  %781 = vmatprep.subr.mxu0 0.0
  %782 = vmatpush2.msra.mxu0 0.0
  %783 = vmatprep.subr.mxu0 0.0
  %784 = vmatpush2.msra.mxu0 0.0
  %785 = vmatprep.subr.mxu0 0.0
  %786 = vmatpush2.msra.mxu0 0.0
  %787 = vmatprep.subr.mxu0 0.0
  %788 = vmatpush2.msra.mxu0 0.0
  %789 = vmatprep.mubr.f32.mxu0 0.0
  %v790 = vand.u32 %v496, 4294901760
  %v791 = vsub.f32 %v496, %v790
  %v792 = vand.u32 %v791, 4294901760
  %793 = vmatmul.mubr.f32.gmra.mxu0 %v792
  %v794 = vpop.f32.mrf.mxu0
  %v795 = vadd.f32 %v721, %v794
  %v796 = vpop.f32.mrf.mxu0
  %797 = vdwg.mxu0
  %798 = vmatprep.subr.mxu0 0.0
  %799 = vmatpush1.msra.mxu0 0.0
  %800 = vmatprep.subr.mxu0 0.0
  %801 = vmatpush1.msra.mxu0 0.0
  %802 = vmatprep.subr.mxu0 0.0
  %803 = vmatpush1.msra.mxu0 0.0
  %804 = vmatprep.subr.mxu0 0.0
  %805 = vmatpush1.msra.mxu0 0.0
  %806 = vmatprep.subr.mxu0 0.0
  %807 = vmatpush1.msra.mxu0 0.0
  %808 = vmatprep.subr.mxu0 0.0
  %809 = vmatpush1.msra.mxu0 0.0
  %810 = vmatprep.subr.mxu0 0.0
  %811 = vmatpush1.msra.mxu0 0.0
  %812 = vmatprep.subr.mxu0 0.0
  %813 = vmatpush1.msra.mxu0 0.0
  %814 = vmatprep.subr.mxu0 0.0
  %815 = vmatpush1.msra.mxu0 0.0
  %816 = vmatprep.subr.mxu0 0.0
  %817 = vmatpush1.msra.mxu0 0.0
  %818 = vmatprep.subr.mxu0 0.0
  %819 = vmatpush1.msra.mxu0 0.0
  %820 = vmatprep.subr.mxu0 0.0
  %821 = vmatpush1.msra.mxu0 0.0
  %822 = vmatprep.subr.mxu0 0.0
  %823 = vmatpush1.msra.mxu0 0.0
  %824 = vmatprep.subr.mxu0 0.0
  %825 = vmatpush1.msra.mxu0 0.0
  %826 = vmatprep.subr.mxu0 0.0
  %827 = vmatpush1.msra.mxu0 0.0
  %828 = vmatprep.subr.mxu0 0.0
  %v829 = vand.u32 %v492, 4294901760
  %v830 = vsub.f32 %v492, %v829
  %v831 = vand.u32 %v830, 4294901760
  %832 = vmatpush1.msra.mxu0 %v831
  %833 = vmatprep.subr.mxu0 0.0
  %834 = vmatpush2.msra.mxu0 0.0
  %835 = vmatprep.subr.mxu0 0.0
  %836 = vmatpush2.msra.mxu0 0.0
  %837 = vmatprep.subr.mxu0 0.0
  %838 = vmatpush2.msra.mxu0 0.0
  %839 = vmatprep.subr.mxu0 0.0
  %840 = vmatpush2.msra.mxu0 0.0
  %841 = vmatprep.subr.mxu0 0.0
  %842 = vmatpush2.msra.mxu0 0.0
  %843 = vmatprep.subr.mxu0 0.0
  %844 = vmatpush2.msra.mxu0 0.0
  %845 = vmatprep.subr.mxu0 0.0
  %846 = vmatpush2.msra.mxu0 0.0
  %847 = vmatprep.subr.mxu0 0.0
  %848 = vmatpush2.msra.mxu0 0.0
  %849 = vmatprep.subr.mxu0 0.0
  %850 = vmatpush2.msra.mxu0 0.0
  %851 = vmatprep.subr.mxu0 0.0
  %852 = vmatpush2.msra.mxu0 0.0
  %853 = vmatprep.subr.mxu0 0.0
  %854 = vmatpush2.msra.mxu0 0.0
  %855 = vmatprep.subr.mxu0 0.0
  %856 = vmatpush2.msra.mxu0 0.0
  %857 = vmatprep.subr.mxu0 0.0
  %858 = vmatpush2.msra.mxu0 0.0
  %859 = vmatprep.subr.mxu0 0.0
  %860 = vmatpush2.msra.mxu0 0.0
  %861 = vmatprep.subr.mxu0 0.0
  %862 = vmatpush2.msra.mxu0 0.0
  %863 = vmatprep.subr.mxu0 0.0
  %864 = vmatpush2.msra.mxu0 0.0
  %865 = vmatprep.mubr.f32.mxu0 0.0
  %v866 = vand.u32 %v496, 4294901760
  %867 = vmatmul.mubr.f32.gmra.mxu0 %v866
  %v868 = vpop.f32.mrf.mxu0
  %v869 = vadd.f32 %v795, %v868
  %v870 = vpop.f32.mrf.mxu0
  %871 = vdwg.mxu0
  %872 = vmatprep.subr.mxu0 0.0
  %873 = vmatpush1.msra.mxu0 0.0
  %874 = vmatprep.subr.mxu0 0.0
  %875 = vmatpush1.msra.mxu0 0.0
  %876 = vmatprep.subr.mxu0 0.0
  %877 = vmatpush1.msra.mxu0 0.0
  %878 = vmatprep.subr.mxu0 0.0
  %879 = vmatpush1.msra.mxu0 0.0
  %880 = vmatprep.subr.mxu0 0.0
  %881 = vmatpush1.msra.mxu0 0.0
  %882 = vmatprep.subr.mxu0 0.0
  %883 = vmatpush1.msra.mxu0 0.0
  %884 = vmatprep.subr.mxu0 0.0
  %885 = vmatpush1.msra.mxu0 0.0
  %886 = vmatprep.subr.mxu0 0.0
  %887 = vmatpush1.msra.mxu0 0.0
  %888 = vmatprep.subr.mxu0 0.0
  %889 = vmatpush1.msra.mxu0 0.0
  %890 = vmatprep.subr.mxu0 0.0
  %891 = vmatpush1.msra.mxu0 0.0
  %892 = vmatprep.subr.mxu0 0.0
  %893 = vmatpush1.msra.mxu0 0.0
  %894 = vmatprep.subr.mxu0 0.0
  %895 = vmatpush1.msra.mxu0 0.0
  %896 = vmatprep.subr.mxu0 0.0
  %897 = vmatpush1.msra.mxu0 0.0
  %898 = vmatprep.subr.mxu0 0.0
  %899 = vmatpush1.msra.mxu0 0.0
  %900 = vmatprep.subr.mxu0 0.0
  %901 = vmatpush1.msra.mxu0 0.0
  %902 = vmatprep.subr.mxu0 0.0
  %v903 = vand.u32 %v492, 4294901760
  %904 = vmatpush1.msra.mxu0 %v903
  %905 = vmatprep.subr.mxu0 0.0
  %906 = vmatpush2.msra.mxu0 0.0
  %907 = vmatprep.subr.mxu0 0.0
  %908 = vmatpush2.msra.mxu0 0.0
  %909 = vmatprep.subr.mxu0 0.0
  %910 = vmatpush2.msra.mxu0 0.0
  %911 = vmatprep.subr.mxu0 0.0
  %912 = vmatpush2.msra.mxu0 0.0
  %913 = vmatprep.subr.mxu0 0.0
  %914 = vmatpush2.msra.mxu0 0.0
  %915 = vmatprep.subr.mxu0 0.0
  %916 = vmatpush2.msra.mxu0 0.0
  %917 = vmatprep.subr.mxu0 0.0
  %918 = vmatpush2.msra.mxu0 0.0
  %919 = vmatprep.subr.mxu0 0.0
  %920 = vmatpush2.msra.mxu0 0.0
  %921 = vmatprep.subr.mxu0 0.0
  %922 = vmatpush2.msra.mxu0 0.0
  %923 = vmatprep.subr.mxu0 0.0
  %924 = vmatpush2.msra.mxu0 0.0
  %925 = vmatprep.subr.mxu0 0.0
  %926 = vmatpush2.msra.mxu0 0.0
  %927 = vmatprep.subr.mxu0 0.0
  %928 = vmatpush2.msra.mxu0 0.0
  %929 = vmatprep.subr.mxu0 0.0
  %930 = vmatpush2.msra.mxu0 0.0
  %931 = vmatprep.subr.mxu0 0.0
  %932 = vmatpush2.msra.mxu0 0.0
  %933 = vmatprep.subr.mxu0 0.0
  %934 = vmatpush2.msra.mxu0 0.0
  %935 = vmatprep.subr.mxu0 0.0
  %936 = vmatpush2.msra.mxu0 0.0
  %937 = vmatprep.mubr.f32.mxu0 0.0
  %v938 = vand.u32 %v496, 4294901760
  %939 = vmatmul.mubr.f32.gmra.mxu0 %v938
  %v940 = vpop.f32.mrf.mxu0
  %v941 = vadd.f32 %v869, %v940
  %v942 = vpop.f32.mrf.mxu0
  %943 = vdwg.mxu0
  %v944 = vsub.f32 0.0, %v941
  %v945 = vmul.f32 %v944, 1.442695
  %v946 = vpow.pop %v945
  %v947 = vadd.f32 %v946, 1.0
  %v948 = vrcp.pop %v947
  %v949 = vmul.f32 1.0, %v948
  %v950 = vld [vmem:[%s5] sm:$0xff]
  %v951 = vld [vmem:[%s6] sm:$0xff]
  %v953 = vsel %vm42, %v950, 0
  %955 = vmatprep.subr.mxu0 0.0
  %956 = vmatpush1.msra.mxu0 0.0
  %957 = vmatprep.subr.mxu0 0.0
  %958 = vmatpush1.msra.mxu0 0.0
  %959 = vmatprep.subr.mxu0 0.0
  %960 = vmatpush1.msra.mxu0 0.0
  %961 = vmatprep.subr.mxu0 0.0
  %962 = vmatpush1.msra.mxu0 0.0
  %963 = vmatprep.subr.mxu0 0.0
  %964 = vmatpush1.msra.mxu0 0.0
  %965 = vmatprep.subr.mxu0 0.0
  %966 = vmatpush1.msra.mxu0 0.0
  %967 = vmatprep.subr.mxu0 0.0
  %968 = vmatpush1.msra.mxu0 0.0
  %969 = vmatprep.subr.mxu0 0.0
  %970 = vmatpush1.msra.mxu0 0.0
  %971 = vmatprep.subr.mxu0 0.0
  %972 = vmatpush1.msra.mxu0 0.0
  %973 = vmatprep.subr.mxu0 0.0
  %974 = vmatpush1.msra.mxu0 0.0
  %975 = vmatprep.subr.mxu0 0.0
  %976 = vmatpush1.msra.mxu0 0.0
  %977 = vmatprep.subr.mxu0 0.0
  %978 = vmatpush1.msra.mxu0 0.0
  %979 = vmatprep.subr.mxu0 0.0
  %980 = vmatpush1.msra.mxu0 0.0
  %981 = vmatprep.subr.mxu0 0.0
  %982 = vmatpush1.msra.mxu0 0.0
  %983 = vmatprep.subr.mxu0 0.0
  %984 = vmatpush1.msra.mxu0 0.0
  %985 = vmatprep.subr.mxu0 0.0
  %v986 = vand.u32 %v39, 4294901760
  %987 = vmatpush1.msra.mxu0 %v986
  %988 = vmatprep.subr.mxu0 0.0
  %989 = vmatpush2.msra.mxu0 0.0
  %990 = vmatprep.subr.mxu0 0.0
  %991 = vmatpush2.msra.mxu0 0.0
  %992 = vmatprep.subr.mxu0 0.0
  %993 = vmatpush2.msra.mxu0 0.0
  %994 = vmatprep.subr.mxu0 0.0
  %995 = vmatpush2.msra.mxu0 0.0
  %996 = vmatprep.subr.mxu0 0.0
  %997 = vmatpush2.msra.mxu0 0.0
  %998 = vmatprep.subr.mxu0 0.0
  %999 = vmatpush2.msra.mxu0 0.0
  %1000 = vmatprep.subr.mxu0 0.0
  %1001 = vmatpush2.msra.mxu0 0.0
  %1002 = vmatprep.subr.mxu0 0.0
  %1003 = vmatpush2.msra.mxu0 0.0
  %1004 = vmatprep.subr.mxu0 0.0
  %1005 = vmatpush2.msra.mxu0 0.0
  %1006 = vmatprep.subr.mxu0 0.0
  %1007 = vmatpush2.msra.mxu0 0.0
  %1008 = vmatprep.subr.mxu0 0.0
  %1009 = vmatpush2.msra.mxu0 0.0
  %1010 = vmatprep.subr.mxu0 0.0
  %1011 = vmatpush2.msra.mxu0 0.0
  %1012 = vmatprep.subr.mxu0 0.0
  %1013 = vmatpush2.msra.mxu0 0.0
  %1014 = vmatprep.subr.mxu0 0.0
  %1015 = vmatpush2.msra.mxu0 0.0
  %1016 = vmatprep.subr.mxu0 0.0
  %1017 = vmatpush2.msra.mxu0 0.0
  %1018 = vmatprep.subr.mxu0 0.0
  %1019 = vmatpush2.msra.mxu0 0.0
  %1020 = vmatprep.mubr.f32.mxu0 0.0
  %v1021 = vand.u32 %v953, 4294901760
  %v1022 = vsub.f32 %v953, %v1021
  %v1023 = vand.u32 %v1022, 4294901760
  %v1024 = vsub.f32 %v1022, %v1023
  %v1025 = vand.u32 %v1024, 4294901760
  %1026 = vmatmul.mubr.f32.gmra.mxu0 %v1025
  %v1027 = vpop.f32.mrf.mxu0
  %v1028 = vadd.f32 %v951, %v1027
  %v1029 = vpop.f32.mrf.mxu0
  %1030 = vdwg.mxu0
  %1031 = vmatprep.subr.mxu0 0.0
  %1032 = vmatpush1.msra.mxu0 0.0
  %1033 = vmatprep.subr.mxu0 0.0
  %1034 = vmatpush1.msra.mxu0 0.0
  %1035 = vmatprep.subr.mxu0 0.0
  %1036 = vmatpush1.msra.mxu0 0.0
  %1037 = vmatprep.subr.mxu0 0.0
  %1038 = vmatpush1.msra.mxu0 0.0
  %1039 = vmatprep.subr.mxu0 0.0
  %1040 = vmatpush1.msra.mxu0 0.0
  %1041 = vmatprep.subr.mxu0 0.0
  %1042 = vmatpush1.msra.mxu0 0.0
  %1043 = vmatprep.subr.mxu0 0.0
  %1044 = vmatpush1.msra.mxu0 0.0
  %1045 = vmatprep.subr.mxu0 0.0
  %1046 = vmatpush1.msra.mxu0 0.0
  %1047 = vmatprep.subr.mxu0 0.0
  %1048 = vmatpush1.msra.mxu0 0.0
  %1049 = vmatprep.subr.mxu0 0.0
  %1050 = vmatpush1.msra.mxu0 0.0
  %1051 = vmatprep.subr.mxu0 0.0
  %1052 = vmatpush1.msra.mxu0 0.0
  %1053 = vmatprep.subr.mxu0 0.0
  %1054 = vmatpush1.msra.mxu0 0.0
  %1055 = vmatprep.subr.mxu0 0.0
  %1056 = vmatpush1.msra.mxu0 0.0
  %1057 = vmatprep.subr.mxu0 0.0
  %1058 = vmatpush1.msra.mxu0 0.0
  %1059 = vmatprep.subr.mxu0 0.0
  %1060 = vmatpush1.msra.mxu0 0.0
  %1061 = vmatprep.subr.mxu0 0.0
  %v1062 = vand.u32 %v39, 4294901760
  %v1063 = vsub.f32 %v39, %v1062
  %v1064 = vand.u32 %v1063, 4294901760
  %v1065 = vsub.f32 %v1063, %v1064
  %v1066 = vand.u32 %v1065, 4294901760
  %1067 = vmatpush1.msra.mxu0 %v1066
  %1068 = vmatprep.subr.mxu0 0.0
  %1069 = vmatpush2.msra.mxu0 0.0
  %1070 = vmatprep.subr.mxu0 0.0
  %1071 = vmatpush2.msra.mxu0 0.0
  %1072 = vmatprep.subr.mxu0 0.0
  %1073 = vmatpush2.msra.mxu0 0.0
  %1074 = vmatprep.subr.mxu0 0.0
  %1075 = vmatpush2.msra.mxu0 0.0
  %1076 = vmatprep.subr.mxu0 0.0
  %1077 = vmatpush2.msra.mxu0 0.0
  %1078 = vmatprep.subr.mxu0 0.0
  %1079 = vmatpush2.msra.mxu0 0.0
  %1080 = vmatprep.subr.mxu0 0.0
  %1081 = vmatpush2.msra.mxu0 0.0
  %1082 = vmatprep.subr.mxu0 0.0
  %1083 = vmatpush2.msra.mxu0 0.0
  %1084 = vmatprep.subr.mxu0 0.0
  %1085 = vmatpush2.msra.mxu0 0.0
  %1086 = vmatprep.subr.mxu0 0.0
  %1087 = vmatpush2.msra.mxu0 0.0
  %1088 = vmatprep.subr.mxu0 0.0
  %1089 = vmatpush2.msra.mxu0 0.0
  %1090 = vmatprep.subr.mxu0 0.0
  %1091 = vmatpush2.msra.mxu0 0.0
  %1092 = vmatprep.subr.mxu0 0.0
  %1093 = vmatpush2.msra.mxu0 0.0
  %1094 = vmatprep.subr.mxu0 0.0
  %1095 = vmatpush2.msra.mxu0 0.0
  %1096 = vmatprep.subr.mxu0 0.0
  %1097 = vmatpush2.msra.mxu0 0.0
  %1098 = vmatprep.subr.mxu0 0.0
  %1099 = vmatpush2.msra.mxu0 0.0
  %1100 = vmatprep.mubr.f32.mxu0 0.0
  %v1101 = vand.u32 %v953, 4294901760
  %1102 = vmatmul.mubr.f32.gmra.mxu0 %v1101
  %v1103 = vpop.f32.mrf.mxu0
  %v1104 = vadd.f32 %v1028, %v1103
  %v1105 = vpop.f32.mrf.mxu0
  %1106 = vdwg.mxu0
  %1107 = vmatprep.subr.mxu0 0.0
  %1108 = vmatpush1.msra.mxu0 0.0
  %1109 = vmatprep.subr.mxu0 0.0
  %1110 = vmatpush1.msra.mxu0 0.0
  %1111 = vmatprep.subr.mxu0 0.0
  %1112 = vmatpush1.msra.mxu0 0.0
  %1113 = vmatprep.subr.mxu0 0.0
  %1114 = vmatpush1.msra.mxu0 0.0
  %1115 = vmatprep.subr.mxu0 0.0
  %1116 = vmatpush1.msra.mxu0 0.0
  %1117 = vmatprep.subr.mxu0 0.0
  %1118 = vmatpush1.msra.mxu0 0.0
  %1119 = vmatprep.subr.mxu0 0.0
  %1120 = vmatpush1.msra.mxu0 0.0
  %1121 = vmatprep.subr.mxu0 0.0
  %1122 = vmatpush1.msra.mxu0 0.0
  %1123 = vmatprep.subr.mxu0 0.0
  %1124 = vmatpush1.msra.mxu0 0.0
  %1125 = vmatprep.subr.mxu0 0.0
  %1126 = vmatpush1.msra.mxu0 0.0
  %1127 = vmatprep.subr.mxu0 0.0
  %1128 = vmatpush1.msra.mxu0 0.0
  %1129 = vmatprep.subr.mxu0 0.0
  %1130 = vmatpush1.msra.mxu0 0.0
  %1131 = vmatprep.subr.mxu0 0.0
  %1132 = vmatpush1.msra.mxu0 0.0
  %1133 = vmatprep.subr.mxu0 0.0
  %1134 = vmatpush1.msra.mxu0 0.0
  %1135 = vmatprep.subr.mxu0 0.0
  %1136 = vmatpush1.msra.mxu0 0.0
  %1137 = vmatprep.subr.mxu0 0.0
  %v1138 = vand.u32 %v39, 4294901760
  %v1139 = vsub.f32 %v39, %v1138
  %1140 = vmatpush1.msra.mxu0 %v1139
  %1141 = vmatprep.subr.mxu0 0.0
  %1142 = vmatpush2.msra.mxu0 0.0
  %1143 = vmatprep.subr.mxu0 0.0
  %1144 = vmatpush2.msra.mxu0 0.0
  %1145 = vmatprep.subr.mxu0 0.0
  %1146 = vmatpush2.msra.mxu0 0.0
  %1147 = vmatprep.subr.mxu0 0.0
  %1148 = vmatpush2.msra.mxu0 0.0
  %1149 = vmatprep.subr.mxu0 0.0
  %1150 = vmatpush2.msra.mxu0 0.0
  %1151 = vmatprep.subr.mxu0 0.0
  %1152 = vmatpush2.msra.mxu0 0.0
  %1153 = vmatprep.subr.mxu0 0.0
  %1154 = vmatpush2.msra.mxu0 0.0
  %1155 = vmatprep.subr.mxu0 0.0
  %1156 = vmatpush2.msra.mxu0 0.0
  %1157 = vmatprep.subr.mxu0 0.0
  %1158 = vmatpush2.msra.mxu0 0.0
  %1159 = vmatprep.subr.mxu0 0.0
  %1160 = vmatpush2.msra.mxu0 0.0
  %1161 = vmatprep.subr.mxu0 0.0
  %1162 = vmatpush2.msra.mxu0 0.0
  %1163 = vmatprep.subr.mxu0 0.0
  %1164 = vmatpush2.msra.mxu0 0.0
  %1165 = vmatprep.subr.mxu0 0.0
  %1166 = vmatpush2.msra.mxu0 0.0
  %1167 = vmatprep.subr.mxu0 0.0
  %1168 = vmatpush2.msra.mxu0 0.0
  %1169 = vmatprep.subr.mxu0 0.0
  %1170 = vmatpush2.msra.mxu0 0.0
  %1171 = vmatprep.subr.mxu0 0.0
  %1172 = vmatpush2.msra.mxu0 0.0
  %1173 = vmatprep.mubr.f32.mxu0 0.0
  %v1174 = vand.u32 %v953, 4294901760
  %v1175 = vsub.f32 %v953, %v1174
  %1176 = vmatmul.mubr.f32.gmra.mxu0 %v1175
  %v1177 = vpop.f32.mrf.mxu0
  %v1178 = vadd.f32 %v1104, %v1177
  %v1179 = vpop.f32.mrf.mxu0
  %1180 = vdwg.mxu0
  %1181 = vmatprep.subr.mxu0 0.0
  %1182 = vmatpush1.msra.mxu0 0.0
  %1183 = vmatprep.subr.mxu0 0.0
  %1184 = vmatpush1.msra.mxu0 0.0
  %1185 = vmatprep.subr.mxu0 0.0
  %1186 = vmatpush1.msra.mxu0 0.0
  %1187 = vmatprep.subr.mxu0 0.0
  %1188 = vmatpush1.msra.mxu0 0.0
  %1189 = vmatprep.subr.mxu0 0.0
  %1190 = vmatpush1.msra.mxu0 0.0
  %1191 = vmatprep.subr.mxu0 0.0
  %1192 = vmatpush1.msra.mxu0 0.0
  %1193 = vmatprep.subr.mxu0 0.0
  %1194 = vmatpush1.msra.mxu0 0.0
  %1195 = vmatprep.subr.mxu0 0.0
  %1196 = vmatpush1.msra.mxu0 0.0
  %1197 = vmatprep.subr.mxu0 0.0
  %1198 = vmatpush1.msra.mxu0 0.0
  %1199 = vmatprep.subr.mxu0 0.0
  %1200 = vmatpush1.msra.mxu0 0.0
  %1201 = vmatprep.subr.mxu0 0.0
  %1202 = vmatpush1.msra.mxu0 0.0
  %1203 = vmatprep.subr.mxu0 0.0
  %1204 = vmatpush1.msra.mxu0 0.0
  %1205 = vmatprep.subr.mxu0 0.0
  %1206 = vmatpush1.msra.mxu0 0.0
  %1207 = vmatprep.subr.mxu0 0.0
  %1208 = vmatpush1.msra.mxu0 0.0
  %1209 = vmatprep.subr.mxu0 0.0
  %1210 = vmatpush1.msra.mxu0 0.0
  %1211 = vmatprep.subr.mxu0 0.0
  %v1212 = vand.u32 %v39, 4294901760
  %1213 = vmatpush1.msra.mxu0 %v1212
  %1214 = vmatprep.subr.mxu0 0.0
  %1215 = vmatpush2.msra.mxu0 0.0
  %1216 = vmatprep.subr.mxu0 0.0
  %1217 = vmatpush2.msra.mxu0 0.0
  %1218 = vmatprep.subr.mxu0 0.0
  %1219 = vmatpush2.msra.mxu0 0.0
  %1220 = vmatprep.subr.mxu0 0.0
  %1221 = vmatpush2.msra.mxu0 0.0
  %1222 = vmatprep.subr.mxu0 0.0
  %1223 = vmatpush2.msra.mxu0 0.0
  %1224 = vmatprep.subr.mxu0 0.0
  %1225 = vmatpush2.msra.mxu0 0.0
  %1226 = vmatprep.subr.mxu0 0.0
  %1227 = vmatpush2.msra.mxu0 0.0
  %1228 = vmatprep.subr.mxu0 0.0
  %1229 = vmatpush2.msra.mxu0 0.0
  %1230 = vmatprep.subr.mxu0 0.0
  %1231 = vmatpush2.msra.mxu0 0.0
  %1232 = vmatprep.subr.mxu0 0.0
  %1233 = vmatpush2.msra.mxu0 0.0
  %1234 = vmatprep.subr.mxu0 0.0
  %1235 = vmatpush2.msra.mxu0 0.0
  %1236 = vmatprep.subr.mxu0 0.0
  %1237 = vmatpush2.msra.mxu0 0.0
  %1238 = vmatprep.subr.mxu0 0.0
  %1239 = vmatpush2.msra.mxu0 0.0
  %1240 = vmatprep.subr.mxu0 0.0
  %1241 = vmatpush2.msra.mxu0 0.0
  %1242 = vmatprep.subr.mxu0 0.0
  %1243 = vmatpush2.msra.mxu0 0.0
  %1244 = vmatprep.subr.mxu0 0.0
  %1245 = vmatpush2.msra.mxu0 0.0
  %1246 = vmatprep.mubr.f32.mxu0 0.0
  %v1247 = vand.u32 %v953, 4294901760
  %v1248 = vsub.f32 %v953, %v1247
  %v1249 = vand.u32 %v1248, 4294901760
  %1250 = vmatmul.mubr.f32.gmra.mxu0 %v1249
  %v1251 = vpop.f32.mrf.mxu0
  %v1252 = vadd.f32 %v1178, %v1251
  %v1253 = vpop.f32.mrf.mxu0
  %1254 = vdwg.mxu0
  %1255 = vmatprep.subr.mxu0 0.0
  %1256 = vmatpush1.msra.mxu0 0.0
  %1257 = vmatprep.subr.mxu0 0.0
  %1258 = vmatpush1.msra.mxu0 0.0
  %1259 = vmatprep.subr.mxu0 0.0
  %1260 = vmatpush1.msra.mxu0 0.0
  %1261 = vmatprep.subr.mxu0 0.0
  %1262 = vmatpush1.msra.mxu0 0.0
  %1263 = vmatprep.subr.mxu0 0.0
  %1264 = vmatpush1.msra.mxu0 0.0
  %1265 = vmatprep.subr.mxu0 0.0
  %1266 = vmatpush1.msra.mxu0 0.0
  %1267 = vmatprep.subr.mxu0 0.0
  %1268 = vmatpush1.msra.mxu0 0.0
  %1269 = vmatprep.subr.mxu0 0.0
  %1270 = vmatpush1.msra.mxu0 0.0
  %1271 = vmatprep.subr.mxu0 0.0
  %1272 = vmatpush1.msra.mxu0 0.0
  %1273 = vmatprep.subr.mxu0 0.0
  %1274 = vmatpush1.msra.mxu0 0.0
  %1275 = vmatprep.subr.mxu0 0.0
  %1276 = vmatpush1.msra.mxu0 0.0
  %1277 = vmatprep.subr.mxu0 0.0
  %1278 = vmatpush1.msra.mxu0 0.0
  %1279 = vmatprep.subr.mxu0 0.0
  %1280 = vmatpush1.msra.mxu0 0.0
  %1281 = vmatprep.subr.mxu0 0.0
  %1282 = vmatpush1.msra.mxu0 0.0
  %1283 = vmatprep.subr.mxu0 0.0
  %1284 = vmatpush1.msra.mxu0 0.0
  %1285 = vmatprep.subr.mxu0 0.0
  %v1286 = vand.u32 %v39, 4294901760
  %v1287 = vsub.f32 %v39, %v1286
  %v1288 = vand.u32 %v1287, 4294901760
  %1289 = vmatpush1.msra.mxu0 %v1288
  %1290 = vmatprep.subr.mxu0 0.0
  %1291 = vmatpush2.msra.mxu0 0.0
  %1292 = vmatprep.subr.mxu0 0.0
  %1293 = vmatpush2.msra.mxu0 0.0
  %1294 = vmatprep.subr.mxu0 0.0
  %1295 = vmatpush2.msra.mxu0 0.0
  %1296 = vmatprep.subr.mxu0 0.0
  %1297 = vmatpush2.msra.mxu0 0.0
  %1298 = vmatprep.subr.mxu0 0.0
  %1299 = vmatpush2.msra.mxu0 0.0
  %1300 = vmatprep.subr.mxu0 0.0
  %1301 = vmatpush2.msra.mxu0 0.0
  %1302 = vmatprep.subr.mxu0 0.0
  %1303 = vmatpush2.msra.mxu0 0.0
  %1304 = vmatprep.subr.mxu0 0.0
  %1305 = vmatpush2.msra.mxu0 0.0
  %1306 = vmatprep.subr.mxu0 0.0
  %1307 = vmatpush2.msra.mxu0 0.0
  %1308 = vmatprep.subr.mxu0 0.0
  %1309 = vmatpush2.msra.mxu0 0.0
  %1310 = vmatprep.subr.mxu0 0.0
  %1311 = vmatpush2.msra.mxu0 0.0
  %1312 = vmatprep.subr.mxu0 0.0
  %1313 = vmatpush2.msra.mxu0 0.0
  %1314 = vmatprep.subr.mxu0 0.0
  %1315 = vmatpush2.msra.mxu0 0.0
  %1316 = vmatprep.subr.mxu0 0.0
  %1317 = vmatpush2.msra.mxu0 0.0
  %1318 = vmatprep.subr.mxu0 0.0
  %1319 = vmatpush2.msra.mxu0 0.0
  %1320 = vmatprep.subr.mxu0 0.0
  %1321 = vmatpush2.msra.mxu0 0.0
  %1322 = vmatprep.mubr.f32.mxu0 0.0
  %v1323 = vand.u32 %v953, 4294901760
  %1324 = vmatmul.mubr.f32.gmra.mxu0 %v1323
  %v1325 = vpop.f32.mrf.mxu0
  %v1326 = vadd.f32 %v1252, %v1325
  %v1327 = vpop.f32.mrf.mxu0
  %1328 = vdwg.mxu0
  %1329 = vmatprep.subr.mxu0 0.0
  %1330 = vmatpush1.msra.mxu0 0.0
  %1331 = vmatprep.subr.mxu0 0.0
  %1332 = vmatpush1.msra.mxu0 0.0
  %1333 = vmatprep.subr.mxu0 0.0
  %1334 = vmatpush1.msra.mxu0 0.0
  %1335 = vmatprep.subr.mxu0 0.0
  %1336 = vmatpush1.msra.mxu0 0.0
  %1337 = vmatprep.subr.mxu0 0.0
  %1338 = vmatpush1.msra.mxu0 0.0
  %1339 = vmatprep.subr.mxu0 0.0
  %1340 = vmatpush1.msra.mxu0 0.0
  %1341 = vmatprep.subr.mxu0 0.0
  %1342 = vmatpush1.msra.mxu0 0.0
  %1343 = vmatprep.subr.mxu0 0.0
  %1344 = vmatpush1.msra.mxu0 0.0
  %1345 = vmatprep.subr.mxu0 0.0
  %1346 = vmatpush1.msra.mxu0 0.0
  %1347 = vmatprep.subr.mxu0 0.0
  %1348 = vmatpush1.msra.mxu0 0.0
  %1349 = vmatprep.subr.mxu0 0.0
  %1350 = vmatpush1.msra.mxu0 0.0
  %1351 = vmatprep.subr.mxu0 0.0
  %1352 = vmatpush1.msra.mxu0 0.0
  %1353 = vmatprep.subr.mxu0 0.0
  %1354 = vmatpush1.msra.mxu0 0.0
  %1355 = vmatprep.subr.mxu0 0.0
  %1356 = vmatpush1.msra.mxu0 0.0
  %1357 = vmatprep.subr.mxu0 0.0
  %1358 = vmatpush1.msra.mxu0 0.0
  %1359 = vmatprep.subr.mxu0 0.0
  %v1360 = vand.u32 %v39, 4294901760
  %1361 = vmatpush1.msra.mxu0 %v1360
  %1362 = vmatprep.subr.mxu0 0.0
  %1363 = vmatpush2.msra.mxu0 0.0
  %1364 = vmatprep.subr.mxu0 0.0
  %1365 = vmatpush2.msra.mxu0 0.0
  %1366 = vmatprep.subr.mxu0 0.0
  %1367 = vmatpush2.msra.mxu0 0.0
  %1368 = vmatprep.subr.mxu0 0.0
  %1369 = vmatpush2.msra.mxu0 0.0
  %1370 = vmatprep.subr.mxu0 0.0
  %1371 = vmatpush2.msra.mxu0 0.0
  %1372 = vmatprep.subr.mxu0 0.0
  %1373 = vmatpush2.msra.mxu0 0.0
  %1374 = vmatprep.subr.mxu0 0.0
  %1375 = vmatpush2.msra.mxu0 0.0
  %1376 = vmatprep.subr.mxu0 0.0
  %1377 = vmatpush2.msra.mxu0 0.0
  %1378 = vmatprep.subr.mxu0 0.0
  %1379 = vmatpush2.msra.mxu0 0.0
  %1380 = vmatprep.subr.mxu0 0.0
  %1381 = vmatpush2.msra.mxu0 0.0
  %1382 = vmatprep.subr.mxu0 0.0
  %1383 = vmatpush2.msra.mxu0 0.0
  %1384 = vmatprep.subr.mxu0 0.0
  %1385 = vmatpush2.msra.mxu0 0.0
  %1386 = vmatprep.subr.mxu0 0.0
  %1387 = vmatpush2.msra.mxu0 0.0
  %1388 = vmatprep.subr.mxu0 0.0
  %1389 = vmatpush2.msra.mxu0 0.0
  %1390 = vmatprep.subr.mxu0 0.0
  %1391 = vmatpush2.msra.mxu0 0.0
  %1392 = vmatprep.subr.mxu0 0.0
  %1393 = vmatpush2.msra.mxu0 0.0
  %1394 = vmatprep.mubr.f32.mxu0 0.0
  %v1395 = vand.u32 %v953, 4294901760
  %1396 = vmatmul.mubr.f32.gmra.mxu0 %v1395
  %v1397 = vpop.f32.mrf.mxu0
  %v1398 = vadd.f32 %v1326, %v1397
  %v1399 = vpop.f32.mrf.mxu0
  %1400 = vdwg.mxu0
  %v1401 = vmax.f32 %v1398, 0.0
  %v1402 = vld [vmem:[%s7] sm:$0xff]
  %v1403 = vld [vmem:[%s8] sm:$0xff]
  %v1405 = vsel %vm42, %v1402, 0
  %1407 = vmatprep.subr.mxu0 0.0
  %1408 = vmatpush1.msra.mxu0 0.0
  %1409 = vmatprep.subr.mxu0 0.0
  %1410 = vmatpush1.msra.mxu0 0.0
  %1411 = vmatprep.subr.mxu0 0.0
  %1412 = vmatpush1.msra.mxu0 0.0
  %1413 = vmatprep.subr.mxu0 0.0
  %1414 = vmatpush1.msra.mxu0 0.0
  %1415 = vmatprep.subr.mxu0 0.0
  %1416 = vmatpush1.msra.mxu0 0.0
  %1417 = vmatprep.subr.mxu0 0.0
  %1418 = vmatpush1.msra.mxu0 0.0
  %1419 = vmatprep.subr.mxu0 0.0
  %1420 = vmatpush1.msra.mxu0 0.0
  %1421 = vmatprep.subr.mxu0 0.0
  %1422 = vmatpush1.msra.mxu0 0.0
  %1423 = vmatprep.subr.mxu0 0.0
  %1424 = vmatpush1.msra.mxu0 0.0
  %1425 = vmatprep.subr.mxu0 0.0
  %1426 = vmatpush1.msra.mxu0 0.0
  %1427 = vmatprep.subr.mxu0 0.0
  %1428 = vmatpush1.msra.mxu0 0.0
  %1429 = vmatprep.subr.mxu0 0.0
  %1430 = vmatpush1.msra.mxu0 0.0
  %1431 = vmatprep.subr.mxu0 0.0
  %1432 = vmatpush1.msra.mxu0 0.0
  %1433 = vmatprep.subr.mxu0 0.0
  %1434 = vmatpush1.msra.mxu0 0.0
  %1435 = vmatprep.subr.mxu0 0.0
  %1436 = vmatpush1.msra.mxu0 0.0
  %1437 = vmatprep.subr.mxu0 0.0
  %v1438 = vand.u32 %v1401, 4294901760
  %1439 = vmatpush1.msra.mxu0 %v1438
  %1440 = vmatprep.subr.mxu0 0.0
  %1441 = vmatpush2.msra.mxu0 0.0
  %1442 = vmatprep.subr.mxu0 0.0
  %1443 = vmatpush2.msra.mxu0 0.0
  %1444 = vmatprep.subr.mxu0 0.0
  %1445 = vmatpush2.msra.mxu0 0.0
  %1446 = vmatprep.subr.mxu0 0.0
  %1447 = vmatpush2.msra.mxu0 0.0
  %1448 = vmatprep.subr.mxu0 0.0
  %1449 = vmatpush2.msra.mxu0 0.0
  %1450 = vmatprep.subr.mxu0 0.0
  %1451 = vmatpush2.msra.mxu0 0.0
  %1452 = vmatprep.subr.mxu0 0.0
  %1453 = vmatpush2.msra.mxu0 0.0
  %1454 = vmatprep.subr.mxu0 0.0
  %1455 = vmatpush2.msra.mxu0 0.0
  %1456 = vmatprep.subr.mxu0 0.0
  %1457 = vmatpush2.msra.mxu0 0.0
  %1458 = vmatprep.subr.mxu0 0.0
  %1459 = vmatpush2.msra.mxu0 0.0
  %1460 = vmatprep.subr.mxu0 0.0
  %1461 = vmatpush2.msra.mxu0 0.0
  %1462 = vmatprep.subr.mxu0 0.0
  %1463 = vmatpush2.msra.mxu0 0.0
  %1464 = vmatprep.subr.mxu0 0.0
  %1465 = vmatpush2.msra.mxu0 0.0
  %1466 = vmatprep.subr.mxu0 0.0
  %1467 = vmatpush2.msra.mxu0 0.0
  %1468 = vmatprep.subr.mxu0 0.0
  %1469 = vmatpush2.msra.mxu0 0.0
  %1470 = vmatprep.subr.mxu0 0.0
  %1471 = vmatpush2.msra.mxu0 0.0
  %1472 = vmatprep.mubr.f32.mxu0 0.0
  %v1473 = vand.u32 %v1405, 4294901760
  %v1474 = vsub.f32 %v1405, %v1473
  %v1475 = vand.u32 %v1474, 4294901760
  %v1476 = vsub.f32 %v1474, %v1475
  %v1477 = vand.u32 %v1476, 4294901760
  %1478 = vmatmul.mubr.f32.gmra.mxu0 %v1477
  %v1479 = vpop.f32.mrf.mxu0
  %v1480 = vadd.f32 %v1403, %v1479
  %v1481 = vpop.f32.mrf.mxu0
  %1482 = vdwg.mxu0
  %1483 = vmatprep.subr.mxu0 0.0
  %1484 = vmatpush1.msra.mxu0 0.0
  %1485 = vmatprep.subr.mxu0 0.0
  %1486 = vmatpush1.msra.mxu0 0.0
  %1487 = vmatprep.subr.mxu0 0.0
  %1488 = vmatpush1.msra.mxu0 0.0
  %1489 = vmatprep.subr.mxu0 0.0
  %1490 = vmatpush1.msra.mxu0 0.0
  %1491 = vmatprep.subr.mxu0 0.0
  %1492 = vmatpush1.msra.mxu0 0.0
  %1493 = vmatprep.subr.mxu0 0.0
  %1494 = vmatpush1.msra.mxu0 0.0
  %1495 = vmatprep.subr.mxu0 0.0
  %1496 = vmatpush1.msra.mxu0 0.0
  %1497 = vmatprep.subr.mxu0 0.0
  %1498 = vmatpush1.msra.mxu0 0.0
  %1499 = vmatprep.subr.mxu0 0.0
  %1500 = vmatpush1.msra.mxu0 0.0
  %1501 = vmatprep.subr.mxu0 0.0
  %1502 = vmatpush1.msra.mxu0 0.0
  %1503 = vmatprep.subr.mxu0 0.0
  %1504 = vmatpush1.msra.mxu0 0.0
  %1505 = vmatprep.subr.mxu0 0.0
  %1506 = vmatpush1.msra.mxu0 0.0
  %1507 = vmatprep.subr.mxu0 0.0
  %1508 = vmatpush1.msra.mxu0 0.0
  %1509 = vmatprep.subr.mxu0 0.0
  %1510 = vmatpush1.msra.mxu0 0.0
  %1511 = vmatprep.subr.mxu0 0.0
  %1512 = vmatpush1.msra.mxu0 0.0
  %1513 = vmatprep.subr.mxu0 0.0
  %v1514 = vand.u32 %v1401, 4294901760
  %v1515 = vsub.f32 %v1401, %v1514
  %v1516 = vand.u32 %v1515, 4294901760
  %v1517 = vsub.f32 %v1515, %v1516
  %v1518 = vand.u32 %v1517, 4294901760
  %1519 = vmatpush1.msra.mxu0 %v1518
  %1520 = vmatprep.subr.mxu0 0.0
  %1521 = vmatpush2.msra.mxu0 0.0
  %1522 = vmatprep.subr.mxu0 0.0
  %1523 = vmatpush2.msra.mxu0 0.0
  %1524 = vmatprep.subr.mxu0 0.0
  %1525 = vmatpush2.msra.mxu0 0.0
  %1526 = vmatprep.subr.mxu0 0.0
  %1527 = vmatpush2.msra.mxu0 0.0
  %1528 = vmatprep.subr.mxu0 0.0
  %1529 = vmatpush2.msra.mxu0 0.0
  %1530 = vmatprep.subr.mxu0 0.0
  %1531 = vmatpush2.msra.mxu0 0.0
  %1532 = vmatprep.subr.mxu0 0.0
  %1533 = vmatpush2.msra.mxu0 0.0
  %1534 = vmatprep.subr.mxu0 0.0
  %1535 = vmatpush2.msra.mxu0 0.0
  %1536 = vmatprep.subr.mxu0 0.0
  %1537 = vmatpush2.msra.mxu0 0.0
  %1538 = vmatprep.subr.mxu0 0.0
  %1539 = vmatpush2.msra.mxu0 0.0
  %1540 = vmatprep.subr.mxu0 0.0
  %1541 = vmatpush2.msra.mxu0 0.0
  %1542 = vmatprep.subr.mxu0 0.0
  %1543 = vmatpush2.msra.mxu0 0.0
  %1544 = vmatprep.subr.mxu0 0.0
  %1545 = vmatpush2.msra.mxu0 0.0
  %1546 = vmatprep.subr.mxu0 0.0
  %1547 = vmatpush2.msra.mxu0 0.0
  %1548 = vmatprep.subr.mxu0 0.0
  %1549 = vmatpush2.msra.mxu0 0.0
  %1550 = vmatprep.subr.mxu0 0.0
  %1551 = vmatpush2.msra.mxu0 0.0
  %1552 = vmatprep.mubr.f32.mxu0 0.0
  %v1553 = vand.u32 %v1405, 4294901760
  %1554 = vmatmul.mubr.f32.gmra.mxu0 %v1553
  %v1555 = vpop.f32.mrf.mxu0
  %v1556 = vadd.f32 %v1480, %v1555
  %v1557 = vpop.f32.mrf.mxu0
  %1558 = vdwg.mxu0
  %1559 = vmatprep.subr.mxu0 0.0
  %1560 = vmatpush1.msra.mxu0 0.0
  %1561 = vmatprep.subr.mxu0 0.0
  %1562 = vmatpush1.msra.mxu0 0.0
  %1563 = vmatprep.subr.mxu0 0.0
  %1564 = vmatpush1.msra.mxu0 0.0
  %1565 = vmatprep.subr.mxu0 0.0
  %1566 = vmatpush1.msra.mxu0 0.0
  %1567 = vmatprep.subr.mxu0 0.0
  %1568 = vmatpush1.msra.mxu0 0.0
  %1569 = vmatprep.subr.mxu0 0.0
  %1570 = vmatpush1.msra.mxu0 0.0
  %1571 = vmatprep.subr.mxu0 0.0
  %1572 = vmatpush1.msra.mxu0 0.0
  %1573 = vmatprep.subr.mxu0 0.0
  %1574 = vmatpush1.msra.mxu0 0.0
  %1575 = vmatprep.subr.mxu0 0.0
  %1576 = vmatpush1.msra.mxu0 0.0
  %1577 = vmatprep.subr.mxu0 0.0
  %1578 = vmatpush1.msra.mxu0 0.0
  %1579 = vmatprep.subr.mxu0 0.0
  %1580 = vmatpush1.msra.mxu0 0.0
  %1581 = vmatprep.subr.mxu0 0.0
  %1582 = vmatpush1.msra.mxu0 0.0
  %1583 = vmatprep.subr.mxu0 0.0
  %1584 = vmatpush1.msra.mxu0 0.0
  %1585 = vmatprep.subr.mxu0 0.0
  %1586 = vmatpush1.msra.mxu0 0.0
  %1587 = vmatprep.subr.mxu0 0.0
  %1588 = vmatpush1.msra.mxu0 0.0
  %1589 = vmatprep.subr.mxu0 0.0
  %v1590 = vand.u32 %v1401, 4294901760
  %v1591 = vsub.f32 %v1401, %v1590
  %1592 = vmatpush1.msra.mxu0 %v1591
  %1593 = vmatprep.subr.mxu0 0.0
  %1594 = vmatpush2.msra.mxu0 0.0
  %1595 = vmatprep.subr.mxu0 0.0
  %1596 = vmatpush2.msra.mxu0 0.0
  %1597 = vmatprep.subr.mxu0 0.0
  %1598 = vmatpush2.msra.mxu0 0.0
  %1599 = vmatprep.subr.mxu0 0.0
  %1600 = vmatpush2.msra.mxu0 0.0
  %1601 = vmatprep.subr.mxu0 0.0
  %1602 = vmatpush2.msra.mxu0 0.0
  %1603 = vmatprep.subr.mxu0 0.0
  %1604 = vmatpush2.msra.mxu0 0.0
  %1605 = vmatprep.subr.mxu0 0.0
  %1606 = vmatpush2.msra.mxu0 0.0
  %1607 = vmatprep.subr.mxu0 0.0
  %1608 = vmatpush2.msra.mxu0 0.0
  %1609 = vmatprep.subr.mxu0 0.0
  %1610 = vmatpush2.msra.mxu0 0.0
  %1611 = vmatprep.subr.mxu0 0.0
  %1612 = vmatpush2.msra.mxu0 0.0
  %1613 = vmatprep.subr.mxu0 0.0
  %1614 = vmatpush2.msra.mxu0 0.0
  %1615 = vmatprep.subr.mxu0 0.0
  %1616 = vmatpush2.msra.mxu0 0.0
  %1617 = vmatprep.subr.mxu0 0.0
  %1618 = vmatpush2.msra.mxu0 0.0
  %1619 = vmatprep.subr.mxu0 0.0
  %1620 = vmatpush2.msra.mxu0 0.0
  %1621 = vmatprep.subr.mxu0 0.0
  %1622 = vmatpush2.msra.mxu0 0.0
  %1623 = vmatprep.subr.mxu0 0.0
  %1624 = vmatpush2.msra.mxu0 0.0
  %1625 = vmatprep.mubr.f32.mxu0 0.0
  %v1626 = vand.u32 %v1405, 4294901760
  %v1627 = vsub.f32 %v1405, %v1626
  %1628 = vmatmul.mubr.f32.gmra.mxu0 %v1627
  %v1629 = vpop.f32.mrf.mxu0
  %v1630 = vadd.f32 %v1556, %v1629
  %v1631 = vpop.f32.mrf.mxu0
  %1632 = vdwg.mxu0
  %1633 = vmatprep.subr.mxu0 0.0
  %1634 = vmatpush1.msra.mxu0 0.0
  %1635 = vmatprep.subr.mxu0 0.0
  %1636 = vmatpush1.msra.mxu0 0.0
  %1637 = vmatprep.subr.mxu0 0.0
  %1638 = vmatpush1.msra.mxu0 0.0
  %1639 = vmatprep.subr.mxu0 0.0
  %1640 = vmatpush1.msra.mxu0 0.0
  %1641 = vmatprep.subr.mxu0 0.0
  %1642 = vmatpush1.msra.mxu0 0.0
  %1643 = vmatprep.subr.mxu0 0.0
  %1644 = vmatpush1.msra.mxu0 0.0
  %1645 = vmatprep.subr.mxu0 0.0
  %1646 = vmatpush1.msra.mxu0 0.0
  %1647 = vmatprep.subr.mxu0 0.0
  %1648 = vmatpush1.msra.mxu0 0.0
  %1649 = vmatprep.subr.mxu0 0.0
  %1650 = vmatpush1.msra.mxu0 0.0
  %1651 = vmatprep.subr.mxu0 0.0
  %1652 = vmatpush1.msra.mxu0 0.0
  %1653 = vmatprep.subr.mxu0 0.0
  %1654 = vmatpush1.msra.mxu0 0.0
  %1655 = vmatprep.subr.mxu0 0.0
  %1656 = vmatpush1.msra.mxu0 0.0
  %1657 = vmatprep.subr.mxu0 0.0
  %1658 = vmatpush1.msra.mxu0 0.0
  %1659 = vmatprep.subr.mxu0 0.0
  %1660 = vmatpush1.msra.mxu0 0.0
  %1661 = vmatprep.subr.mxu0 0.0
  %1662 = vmatpush1.msra.mxu0 0.0
  %1663 = vmatprep.subr.mxu0 0.0
  %v1664 = vand.u32 %v1401, 4294901760
  %1665 = vmatpush1.msra.mxu0 %v1664
  %1666 = vmatprep.subr.mxu0 0.0
  %1667 = vmatpush2.msra.mxu0 0.0
  %1668 = vmatprep.subr.mxu0 0.0
  %1669 = vmatpush2.msra.mxu0 0.0
  %1670 = vmatprep.subr.mxu0 0.0
  %1671 = vmatpush2.msra.mxu0 0.0
  %1672 = vmatprep.subr.mxu0 0.0
  %1673 = vmatpush2.msra.mxu0 0.0
  %1674 = vmatprep.subr.mxu0 0.0
  %1675 = vmatpush2.msra.mxu0 0.0
  %1676 = vmatprep.subr.mxu0 0.0
  %1677 = vmatpush2.msra.mxu0 0.0
  %1678 = vmatprep.subr.mxu0 0.0
  %1679 = vmatpush2.msra.mxu0 0.0
  %1680 = vmatprep.subr.mxu0 0.0
  %1681 = vmatpush2.msra.mxu0 0.0
  %1682 = vmatprep.subr.mxu0 0.0
  %1683 = vmatpush2.msra.mxu0 0.0
  %1684 = vmatprep.subr.mxu0 0.0
  %1685 = vmatpush2.msra.mxu0 0.0
  %1686 = vmatprep.subr.mxu0 0.0
  %1687 = vmatpush2.msra.mxu0 0.0
  %1688 = vmatprep.subr.mxu0 0.0
  %1689 = vmatpush2.msra.mxu0 0.0
  %1690 = vmatprep.subr.mxu0 0.0
  %1691 = vmatpush2.msra.mxu0 0.0
  %1692 = vmatprep.subr.mxu0 0.0
  %1693 = vmatpush2.msra.mxu0 0.0
  %1694 = vmatprep.subr.mxu0 0.0
  %1695 = vmatpush2.msra.mxu0 0.0
  %1696 = vmatprep.subr.mxu0 0.0
  %1697 = vmatpush2.msra.mxu0 0.0
  %1698 = vmatprep.mubr.f32.mxu0 0.0
  %v1699 = vand.u32 %v1405, 4294901760
  %v1700 = vsub.f32 %v1405, %v1699
  %v1701 = vand.u32 %v1700, 4294901760
  %1702 = vmatmul.mubr.f32.gmra.mxu0 %v1701
  %v1703 = vpop.f32.mrf.mxu0
  %v1704 = vadd.f32 %v1630, %v1703
  %v1705 = vpop.f32.mrf.mxu0
  %1706 = vdwg.mxu0
  %1707 = vmatprep.subr.mxu0 0.0
  %1708 = vmatpush1.msra.mxu0 0.0
  %1709 = vmatprep.subr.mxu0 0.0
  %1710 = vmatpush1.msra.mxu0 0.0
  %1711 = vmatprep.subr.mxu0 0.0
  %1712 = vmatpush1.msra.mxu0 0.0
  %1713 = vmatprep.subr.mxu0 0.0
  %1714 = vmatpush1.msra.mxu0 0.0
  %1715 = vmatprep.subr.mxu0 0.0
  %1716 = vmatpush1.msra.mxu0 0.0
  %1717 = vmatprep.subr.mxu0 0.0
  %1718 = vmatpush1.msra.mxu0 0.0
  %1719 = vmatprep.subr.mxu0 0.0
  %1720 = vmatpush1.msra.mxu0 0.0
  %1721 = vmatprep.subr.mxu0 0.0
  %1722 = vmatpush1.msra.mxu0 0.0
  %1723 = vmatprep.subr.mxu0 0.0
  %1724 = vmatpush1.msra.mxu0 0.0
  %1725 = vmatprep.subr.mxu0 0.0
  %1726 = vmatpush1.msra.mxu0 0.0
  %1727 = vmatprep.subr.mxu0 0.0
  %1728 = vmatpush1.msra.mxu0 0.0
  %1729 = vmatprep.subr.mxu0 0.0
  %1730 = vmatpush1.msra.mxu0 0.0
  %1731 = vmatprep.subr.mxu0 0.0
  %1732 = vmatpush1.msra.mxu0 0.0
  %1733 = vmatprep.subr.mxu0 0.0
  %1734 = vmatpush1.msra.mxu0 0.0
  %1735 = vmatprep.subr.mxu0 0.0
  %1736 = vmatpush1.msra.mxu0 0.0
  %1737 = vmatprep.subr.mxu0 0.0
  %v1738 = vand.u32 %v1401, 4294901760
  %v1739 = vsub.f32 %v1401, %v1738
  %v1740 = vand.u32 %v1739, 4294901760
  %1741 = vmatpush1.msra.mxu0 %v1740
  %1742 = vmatprep.subr.mxu0 0.0
  %1743 = vmatpush2.msra.mxu0 0.0
  %1744 = vmatprep.subr.mxu0 0.0
  %1745 = vmatpush2.msra.mxu0 0.0
  %1746 = vmatprep.subr.mxu0 0.0
  %1747 = vmatpush2.msra.mxu0 0.0
  %1748 = vmatprep.subr.mxu0 0.0
  %1749 = vmatpush2.msra.mxu0 0.0
  %1750 = vmatprep.subr.mxu0 0.0
  %1751 = vmatpush2.msra.mxu0 0.0
  %1752 = vmatprep.subr.mxu0 0.0
  %1753 = vmatpush2.msra.mxu0 0.0
  %1754 = vmatprep.subr.mxu0 0.0
  %1755 = vmatpush2.msra.mxu0 0.0
  %1756 = vmatprep.subr.mxu0 0.0
  %1757 = vmatpush2.msra.mxu0 0.0
  %1758 = vmatprep.subr.mxu0 0.0
  %1759 = vmatpush2.msra.mxu0 0.0
  %1760 = vmatprep.subr.mxu0 0.0
  %1761 = vmatpush2.msra.mxu0 0.0
  %1762 = vmatprep.subr.mxu0 0.0
  %1763 = vmatpush2.msra.mxu0 0.0
  %1764 = vmatprep.subr.mxu0 0.0
  %1765 = vmatpush2.msra.mxu0 0.0
  %1766 = vmatprep.subr.mxu0 0.0
  %1767 = vmatpush2.msra.mxu0 0.0
  %1768 = vmatprep.subr.mxu0 0.0
  %1769 = vmatpush2.msra.mxu0 0.0
  %1770 = vmatprep.subr.mxu0 0.0
  %1771 = vmatpush2.msra.mxu0 0.0
  %1772 = vmatprep.subr.mxu0 0.0
  %1773 = vmatpush2.msra.mxu0 0.0
  %1774 = vmatprep.mubr.f32.mxu0 0.0
  %v1775 = vand.u32 %v1405, 4294901760
  %1776 = vmatmul.mubr.f32.gmra.mxu0 %v1775
  %v1777 = vpop.f32.mrf.mxu0
  %v1778 = vadd.f32 %v1704, %v1777
  %v1779 = vpop.f32.mrf.mxu0
  %1780 = vdwg.mxu0
  %1781 = vmatprep.subr.mxu0 0.0
  %1782 = vmatpush1.msra.mxu0 0.0
  %1783 = vmatprep.subr.mxu0 0.0
  %1784 = vmatpush1.msra.mxu0 0.0
  %1785 = vmatprep.subr.mxu0 0.0
  %1786 = vmatpush1.msra.mxu0 0.0
  %1787 = vmatprep.subr.mxu0 0.0
  %1788 = vmatpush1.msra.mxu0 0.0
  %1789 = vmatprep.subr.mxu0 0.0
  %1790 = vmatpush1.msra.mxu0 0.0
  %1791 = vmatprep.subr.mxu0 0.0
  %1792 = vmatpush1.msra.mxu0 0.0
  %1793 = vmatprep.subr.mxu0 0.0
  %1794 = vmatpush1.msra.mxu0 0.0
  %1795 = vmatprep.subr.mxu0 0.0
  %1796 = vmatpush1.msra.mxu0 0.0
  %1797 = vmatprep.subr.mxu0 0.0
  %1798 = vmatpush1.msra.mxu0 0.0
  %1799 = vmatprep.subr.mxu0 0.0
  %1800 = vmatpush1.msra.mxu0 0.0
  %1801 = vmatprep.subr.mxu0 0.0
  %1802 = vmatpush1.msra.mxu0 0.0
  %1803 = vmatprep.subr.mxu0 0.0
  %1804 = vmatpush1.msra.mxu0 0.0
  %1805 = vmatprep.subr.mxu0 0.0
  %1806 = vmatpush1.msra.mxu0 0.0
  %1807 = vmatprep.subr.mxu0 0.0
  %1808 = vmatpush1.msra.mxu0 0.0
  %1809 = vmatprep.subr.mxu0 0.0
  %1810 = vmatpush1.msra.mxu0 0.0
  %1811 = vmatprep.subr.mxu0 0.0
  %v1812 = vand.u32 %v1401, 4294901760
  %1813 = vmatpush1.msra.mxu0 %v1812
  %1814 = vmatprep.subr.mxu0 0.0
  %1815 = vmatpush2.msra.mxu0 0.0
  %1816 = vmatprep.subr.mxu0 0.0
  %1817 = vmatpush2.msra.mxu0 0.0
  %1818 = vmatprep.subr.mxu0 0.0
  %1819 = vmatpush2.msra.mxu0 0.0
  %1820 = vmatprep.subr.mxu0 0.0
  %1821 = vmatpush2.msra.mxu0 0.0
  %1822 = vmatprep.subr.mxu0 0.0
  %1823 = vmatpush2.msra.mxu0 0.0
  %1824 = vmatprep.subr.mxu0 0.0
  %1825 = vmatpush2.msra.mxu0 0.0
  %1826 = vmatprep.subr.mxu0 0.0
  %1827 = vmatpush2.msra.mxu0 0.0
  %1828 = vmatprep.subr.mxu0 0.0
  %1829 = vmatpush2.msra.mxu0 0.0
  %1830 = vmatprep.subr.mxu0 0.0
  %1831 = vmatpush2.msra.mxu0 0.0
  %1832 = vmatprep.subr.mxu0 0.0
  %1833 = vmatpush2.msra.mxu0 0.0
  %1834 = vmatprep.subr.mxu0 0.0
  %1835 = vmatpush2.msra.mxu0 0.0
  %1836 = vmatprep.subr.mxu0 0.0
  %1837 = vmatpush2.msra.mxu0 0.0
  %1838 = vmatprep.subr.mxu0 0.0
  %1839 = vmatpush2.msra.mxu0 0.0
  %1840 = vmatprep.subr.mxu0 0.0
  %1841 = vmatpush2.msra.mxu0 0.0
  %1842 = vmatprep.subr.mxu0 0.0
  %1843 = vmatpush2.msra.mxu0 0.0
  %1844 = vmatprep.subr.mxu0 0.0
  %1845 = vmatpush2.msra.mxu0 0.0
  %1846 = vmatprep.mubr.f32.mxu0 0.0
  %v1847 = vand.u32 %v1405, 4294901760
  %1848 = vmatmul.mubr.f32.gmra.mxu0 %v1847
  %v1849 = vpop.f32.mrf.mxu0
  %v1850 = vadd.f32 %v1778, %v1849
  %v1851 = vpop.f32.mrf.mxu0
  %1852 = vdwg.mxu0
  %v1853 = vsub.f32 0.0, %v1850
  %v1854 = vmul.f32 %v1853, 1.442695
  %v1855 = vpow.pop %v1854
  %v1856 = vadd.f32 %v1855, 1.0
  %v1857 = vrcp.pop %v1856
  %v1858 = vmul.f32 1.0, %v1857
  %v1859 = vsub.f32 %v949, %v1858
  %v1860 = vmax.f32 %v1859, 1e-05
  %v1861 = vrcp.pop %v1860
  %1863 = vset.pattern.permute.xlu0 0
  %1864 = vperm.xlu0 %1863, %v1858
  %v1865 = vpop.permute.xlu0 %1864
  %v1867 = vsub.f32 %v32, %v1865
  %v1868 = vsub.f32 %v33, %v1865
  %1870 = vset.pattern.permute.xlu0 0
  %1871 = vperm.xlu0 %1870, %v1861
  %v1872 = vpop.permute.xlu0 %1871
  %v1874 = vmul.f32 %v1867, %v1872
  %v1875 = vmul.f32 %v1868, %v1872
  %v1876 = vmax.f32 %v1874, 0.0
  %v1877 = vmax.f32 %v1875, 0.0
  %v1878 = vmin.f32 %v1876, 1.0
  %v1879 = vmin.f32 %v1877, 1.0
  %1880 = vst [vmem:[%s9] sm:$0xff] %v1878
  %1881 = vst [vmem:[%s9 + $0x8] sm:$0xff] %v1879
  // Predicated region
  $region38: #{anb_forward.1} parent=0 // pred_check
    _
  $region39: #{anb_forward.1} parent=0 // pred_check_branch
    %1883 = sbr.rel (0) target = $region41
  $region40: #{anb_forward.1} parent=0 // pred_region
    _
  $region41: #{anb_forward.1} parent=0 // pred_fallthru
    _
  // Predicated region
  $region42: #{anb_forward.1} parent=0 // pred_check
    _
  $region43: #{anb_forward.1} parent=0 // pred_check_branch
    %1885 = sbr.rel (0) target = $region45
  $region44: #{anb_forward.1} parent=0 // pred_region
    _
  $region45: #{anb_forward.1} parent=0 // pred_fallthru
    _

</llo_original>
